<compile_context>
chip_gen: v7x
topology: tpu7x:2x2x1
jax: 0.10.0
libtpu: 0.0.40
codegen_flags: <defaults>
</compile_context>

<pallas_src>
from functools import partial

import jax
import jax.numpy as jnp
from jax.experimental import pallas as pl
from jax.experimental.pallas import tpu as pltpu


# ----------------------------- Pallas kernel ------------------------------ #
def block_kernel(x_ref, g1_ref, b1_ref, wqkv_ref, wproj_ref, bproj_ref,
                 g2_ref, b2_ref, w1_ref, bf1_ref, w2_ref, bf2_ref, o_ref,
                 *, n_head, mxu_dtype, approx_recip):
    Bt, T, C = x_ref.shape
    H = n_head
    hs = C // H
    N = Bt * T                                   # flattened rows for 2-D matmuls
    f32 = jnp.float32

    xf = x_ref[...].astype(f32).reshape(N, C)    # (N, C), f32

    def layernorm(z, g, b):                      # statistics kept in f32
        mu = jnp.mean(z, axis=-1, keepdims=True)
        var = jnp.mean((z - mu) ** 2, axis=-1, keepdims=True)
        return (z - mu) * jax.lax.rsqrt(var + 1e-5) * g + b

    # ---- self-attention branch: sa(ln1(x)) ----
    xn = layernorm(xf, g1_ref[...], b1_ref[...])                 # (N, C)

    # ONE flat QKV projection (the 1/sqrt(hs) scale is already folded into the
    # query columns of wqkv by the wrapper).  f32 MXU accumulation.
    qkv = jnp.dot(xn.astype(mxu_dtype), wqkv_ref[...],
                  preferred_element_type=f32)                    # (N, 3C)
    qkv = qkv.reshape(Bt, T, 3 * C).astype(mxu_dtype)            # bf16 in perf config

    # Causal mask built once as (T, T); broadcast over the batch leading dim is free.
    row = jax.lax.broadcasted_iota(jnp.int32, (T, T), 0)
    col = jax.lax.broadcasted_iota(jnp.int32, (T, T), 1)
    causal = (col <= row)[None]                                  # (1, T, T)

    # Per-head scores / softmax / context.  The static Python loop keeps only ONE
    # head's (Bt, T, T) score tensor live at a time; head outputs are concatenated
    # along the channel (minor) dim so the output projection is a single K=C matmul.
    # TODO(synk): flash-style online softmax over KV tiles for very large T.
    heads = []
    for h in range(H):
        q_h = qkv[:, :, h * hs:(h + 1) * hs]                     # (Bt, T, hs)
        k_h = qkv[:, :, C + h * hs:C + (h + 1) * hs]
        v_h = qkv[:, :, 2 * C + h * hs:2 * C + (h + 1) * hs]

        s = jnp.einsum('bqd,bkd->bqk', q_h, k_h,
                       preferred_element_type=f32)               # (Bt, T, T), f32
        s = jnp.where(causal, s, -1e30)                          # causal mask
        s = s - jnp.max(s, axis=-1, keepdims=True)               # stable softmax
        e = jnp.exp(s)
        p = e * pl.reciprocal(jnp.sum(e, axis=-1, keepdims=True),
                              approx=approx_recip)
        heads.append(jnp.einsum('bqk,bkd->bqd', p.astype(mxu_dtype), v_h,
                                preferred_element_type=f32))     # (Bt, T, hs)

    att = jnp.concatenate(heads, axis=-1).reshape(N, C)          # head concat (minor dim)
    sa = jnp.dot(att.astype(mxu_dtype), wproj_ref[...],
                 preferred_element_type=f32) + bproj_ref[...]    # single (N,C)x(C,C)

    x1 = xf + sa                                                 # residual 1

    # ---- feed-forward branch: ffwd(ln2(x1)) ----
    xn2 = layernorm(x1, g2_ref[...], b2_ref[...])
    hdn = jnp.dot(xn2.astype(mxu_dtype), w1_ref[...],
                  preferred_element_type=f32) + bf1_ref[...]
    hdn = jnp.maximum(hdn, 0.0).astype(mxu_dtype)                # ReLU, then narrow once
    ff = jnp.dot(hdn, w2_ref[...], preferred_element_type=f32) + bf2_ref[...]

    o_ref[...] = (x1 + ff).reshape(Bt, T, C).astype(o_ref.dtype) # residual 2


# ------------------------------- wrapper ----------------------------------- #
def _vmem_capacity_bytes():
    """Physical VMEM of the current chip; conservative fallback = v7x per-TC."""
    try:
        cap = getattr(pltpu.get_tpu_info(), "vmem_capacity_bytes", None)
        if cap:
            return int(cap)
    except Exception:
        pass
    return 64 << 20


def _step_bytes(Bt, T, C, w_bytes, mxu_itemsize):
    """Estimated per-grid-step VMEM working set (f32 math, mxu-dtype MXU copies)."""
    N = Bt * T
    act = N * C * 4
    pipeline = 4 * act                          # double-buffered x-in / out tiles
    ln_tmp = 2 * act                            # xn / xn2 style temporaries
    qkv = N * 3 * C * (4 + mxu_itemsize)        # f32 accumulation + mxu-dtype copy
    scores = 2 * Bt * T * T * 4                 # ONE head's scores + exp (per-head loop)
    ctx = N * C * (4 + mxu_itemsize)            # concatenated head outputs
    mlp = N * 4 * C * (4 + mxu_itemsize)        # MLP hidden pre/post cast
    return w_bytes + pipeline + ln_tmp + qkv + scores + ctx + mlp


def _pick_batch_tile(B, T, C, w_bytes, mxu_itemsize, budget):
    """Largest batch tile that divides B, fits the VMEM budget, and keeps >= 2
    grid steps when possible (v7x has 2 TensorCores sharing the parallel axis)."""
    best = 1
    for bt in range(1, B + 1):
        if B % bt:
            continue
        if bt > 1 and T % 8:
            continue                            # keep (Bt*T, C) reshapes sublane-aligned
        if B >= 2 and (B // bt) < 2:
            continue
        if _step_bytes(bt, T, C, w_bytes, mxu_itemsize) > budget:
            continue
        best = bt
    return best


def transformer_block(x, params, n_head, *, mxu_dtype=jnp.float32, batch_tile=None):
    """Fused transformer block.  `params` follow the x @ W convention:
    (g1, b1, wq, wk, wv, wproj, bproj, g2, b2, w1, bf1, w2, bf2)."""
    (g1, b1, wq, wk, wv, wproj, bproj, g2, b2, w1, bf1, w2, bf2) = params
    B, T, C = x.shape
    H = n_head
    assert C % H == 0
    hs = C // H

    # Fuse q/k/v into ONE (C, 3C) weight; fold the 1/sqrt(hs) attention scale into
    # the query columns (zero runtime cost).  Weights cast once to the MXU dtype.
    wqkv = jnp.concatenate([wq * (hs ** -0.5), wk, wv], axis=1).astype(mxu_dtype)
    kparams = (g1, b1, wqkv, wproj.astype(mxu_dtype), bproj, g2, b2,
               w1.astype(mxu_dtype), bf1, w2.astype(mxu_dtype), bf2)

    w_bytes = sum(int(p.size) * jnp.dtype(p.dtype).itemsize for p in kparams)
    mxu_itemsize = jnp.dtype(mxu_dtype).itemsize
    vmem_cap = _vmem_capacity_bytes()
    budget = int(0.75 * vmem_cap)

    Bt = (_pick_batch_tile(B, T, C, w_bytes, mxu_itemsize, budget)
          if batch_tile is None else batch_tile)
    assert B % Bt == 0

    ws = _step_bytes(Bt, T, C, w_bytes, mxu_itemsize)
    vmem_limit = int(min(max(ws + ws // 4 + (4 << 20), 24 << 20),
                         int(0.9 * vmem_cap)))

    # Constant-index weights: single-buffered (their block never changes across the
    # grid, so double-buffering only wastes VMEM).
    def wspec(p):
        nd = p.ndim
        return pl.BlockSpec(p.shape, lambda b, _nd=nd: (0,) * _nd,
                            pipeline_mode=pl.Buffered(1))

    in_specs = ([pl.BlockSpec((Bt, T, C), lambda b: (b, 0, 0))] +
                [wspec(p) for p in kparams])

    approx = bool(jnp.dtype(mxu_dtype) != jnp.dtype(jnp.float32))

    return pl.pallas_call(
        partial(block_kernel, n_head=n_head, mxu_dtype=mxu_dtype, approx_recip=approx),
        out_shape=jax.ShapeDtypeStruct((B, T, C), x.dtype),
        grid=(B // Bt,),
        in_specs=in_specs,
        out_specs=pl.BlockSpec((Bt, T, C), lambda b: (b, 0, 0)),
        compiler_params=pltpu.CompilerParams(
            dimension_semantics=("parallel",),
            vmem_limit_bytes=vmem_limit),
    )(x, *kparams)


# --------------------------- pure-JAX reference ----------------------------- #
def ref_block(x, params, n_head):
    (g1, b1, wq, wk, wv, wproj, bproj, g2, b2, w1, bf1, w2, bf2) = params
    B, T, C = x.shape
    hs = C // n_head

    def ln(z, g, b):
        mu = z.mean(-1, keepdims=True)
        var = ((z - mu) ** 2).mean(-1, keepdims=True)
        return (z - mu) / jnp.sqrt(var + 1e-5) * g + b

    xn = ln(x, g1[0], b1[0])
    q = (xn @ wq).reshape(B, T, n_head, hs).transpose(0, 2, 1, 3)
    k = (xn @ wk).reshape(B, T, n_head, hs).transpose(0, 2, 1, 3)
    v = (xn @ wv).reshape(B, T, n_head, hs).transpose(0, 2, 1, 3)
    wei = jnp.einsum('bhqd,bhkd->bhqk', q, k) * (hs ** -0.5)
    mask = jnp.tril(jnp.ones((T, T), dtype=bool))
    wei = jnp.where(mask, wei, -jnp.inf)
    wei = jax.nn.softmax(wei, axis=-1)
    att = jnp.einsum('bhqk,bhkd->bhqd', wei, v).transpose(0, 2, 1, 3).reshape(B, T, C)
    x1 = x + att @ wproj + bproj[0]
    xn2 = ln(x1, g2[0], b2[0])
    ff = jnp.maximum(xn2 @ w1 + bf1[0], 0.0) @ w2 + bf2[0]
    return x1 + ff


# --------------------------------- main ------------------------------------- #
if __name__ == "__main__":
    B, T, C, n_head = 2, 8, 32, 4          # block_size = T, n_embd = C

    key = jax.random.PRNGKey(0)
    ks = jax.random.split(key, 12)
    scale = 0.02

    g1 = jnp.ones((1, C), jnp.float32)
    b1 = jnp.zeros((1, C), jnp.float32)
    wq = scale * jax.random.normal(ks[0], (C, C), jnp.float32)
    wk = scale * jax.random.normal(ks[1], (C, C), jnp.float32)
    wv = scale * jax.random.normal(ks[2], (C, C), jnp.float32)
    wproj = scale * jax.random.normal(ks[3], (C, C), jnp.float32)
    bproj = scale * jax.random.normal(ks[4], (1, C), jnp.float32)
    g2 = jnp.ones((1, C), jnp.float32)
    b2 = jnp.zeros((1, C), jnp.float32)
    w1 = scale * jax.random.normal(ks[5], (C, 4 * C), jnp.float32)
    bf1 = scale * jax.random.normal(ks[6], (1, 4 * C), jnp.float32)
    w2 = scale * jax.random.normal(ks[7], (4 * C, C), jnp.float32)
    bf2 = scale * jax.random.normal(ks[8], (1, C), jnp.float32)

    params = (g1, b1, wq, wk, wv, wproj, bproj, g2, b2, w1, bf1, w2, bf2)
    x = jax.random.normal(ks[9], (B, T, C), jnp.float32)

    ref = ref_block(x, params, n_head)

    # f32 MXU-operand path: must match the pure-JAX reference tightly.
    out = jax.block_until_ready(transformer_block(x, params, n_head))
    assert out.shape == (B, T, C)
    assert jnp.allclose(out, ref, atol=1e-4, rtol=1e-4), "f32 kernel mismatch vs reference"

    # bf16 MXU operands with f32 accumulation (perf config for v6e/v7x); looser tol.
    out_bf16 = jax.block_until_ready(
        transformer_block(x, params, n_head, mxu_dtype=jnp.bfloat16))
    assert jnp.allclose(out_bf16, ref, atol=5e-2, rtol=5e-2), "bf16 kernel mismatch vs reference"

    print("KERNEL_OK")
</pallas_src>

<mosaic_0001>
module attributes {stable_mosaic.version = 11 : i64} {
  func.func @block_kernel(%arg0: i32, %arg1: memref<1x8x32xf32, #tpu.memory_space<vmem>>, %arg2: memref<1x32xf32, #tpu.memory_space<vmem>>, %arg3: memref<1x32xf32, #tpu.memory_space<vmem>>, %arg4: memref<32x96xf32, #tpu.memory_space<vmem>>, %arg5: memref<32x32xf32, #tpu.memory_space<vmem>>, %arg6: memref<1x32xf32, #tpu.memory_space<vmem>>, %arg7: memref<1x32xf32, #tpu.memory_space<vmem>>, %arg8: memref<1x32xf32, #tpu.memory_space<vmem>>, %arg9: memref<32x128xf32, #tpu.memory_space<vmem>>, %arg10: memref<1x128xf32, #tpu.memory_space<vmem>>, %arg11: memref<128x32xf32, #tpu.memory_space<vmem>>, %arg12: memref<1x32xf32, #tpu.memory_space<vmem>>, %arg13: memref<1x8x32xf32, #tpu.memory_space<vmem>>) attributes {dimension_semantics = [#tpu.dimension_semantics<parallel>], iteration_bounds = array<i64: 2>, scalar_prefetch = 0 : i64, scratch_operands = 0 : i64, tpu.core_type = #tpu.core_type<tc>, window_params = [{transform_indices = @transform_0, window_bounds = array<i64: 1, 8, 32>}, {pipeline_mode = #tpu.pipeline_mode<synchronous>, transform_indices = @transform_1, window_bounds = array<i64: 1, 32>}, {pipeline_mode = #tpu.pipeline_mode<synchronous>, transform_indices = @transform_2, window_bounds = array<i64: 1, 32>}, {pipeline_mode = #tpu.pipeline_mode<synchronous>, transform_indices = @transform_3, window_bounds = array<i64: 32, 96>}, {pipeline_mode = #tpu.pipeline_mode<synchronous>, transform_indices = @transform_4, window_bounds = array<i64: 32, 32>}, {pipeline_mode = #tpu.pipeline_mode<synchronous>, transform_indices = @transform_5, window_bounds = array<i64: 1, 32>}, {pipeline_mode = #tpu.pipeline_mode<synchronous>, transform_indices = @transform_6, window_bounds = array<i64: 1, 32>}, {pipeline_mode = #tpu.pipeline_mode<synchronous>, transform_indices = @transform_7, window_bounds = array<i64: 1, 32>}, {pipeline_mode = #tpu.pipeline_mode<synchronous>, transform_indices = @transform_8, window_bounds = array<i64: 32, 128>}, {pipeline_mode = #tpu.pipeline_mode<synchronous>, transform_indices = @transform_9, window_bounds = array<i64: 1, 128>}, {pipeline_mode = #tpu.pipeline_mode<synchronous>, transform_indices = @transform_10, window_bounds = array<i64: 128, 32>}, {pipeline_mode = #tpu.pipeline_mode<synchronous>, transform_indices = @transform_11, window_bounds = array<i64: 1, 32>}, {transform_indices = @transform_12, window_bounds = array<i64: 1, 8, 32>}]} {
    %c0 = arith.constant 0 : index
    %c0_0 = arith.constant 0 : index
    %c0_1 = arith.constant 0 : index
    %0 = vector.load %arg1[%c0, %c0_0, %c0_1] : memref<1x8x32xf32, #tpu.memory_space<vmem>>, vector<1x8x32xf32>
    %1 = vector.shape_cast %0 : vector<1x8x32xf32> to vector<8x32xf32>
    %c0_2 = arith.constant 0 : index
    %c0_3 = arith.constant 0 : index
    %2 = vector.load %arg2[%c0_2, %c0_3] : memref<1x32xf32, #tpu.memory_space<vmem>>, vector<1x32xf32>
    %c0_4 = arith.constant 0 : index
    %c0_5 = arith.constant 0 : index
    %3 = vector.load %arg3[%c0_4, %c0_5] : memref<1x32xf32, #tpu.memory_space<vmem>>, vector<1x32xf32>
    %cst = arith.constant dense<0.000000e+00> : vector<8xf32>
    %4 = vector.multi_reduction <add>, %1, %cst [1] : vector<8x32xf32> to vector<8xf32>
    %5 = vector.shape_cast %4 : vector<8xf32> to vector<8x1xf32>
    %cst_6 = arith.constant 3.200000e+01 : f32
    %6 = vector.broadcast %cst_6 : f32 to vector<8x1xf32>
    %7 = arith.divf %5, %6 : vector<8x1xf32>
    %8 = vector.broadcast %7 : vector<8x1xf32> to vector<8x32xf32>
    %9 = arith.subf %1, %8 : vector<8x32xf32>
    %10 = arith.mulf %9, %9 : vector<8x32xf32>
    %cst_7 = arith.constant dense<0.000000e+00> : vector<8xf32>
    %11 = vector.multi_reduction <add>, %10, %cst_7 [1] : vector<8x32xf32> to vector<8xf32>
    %12 = vector.shape_cast %11 : vector<8xf32> to vector<8x1xf32>
    %cst_8 = arith.constant 3.200000e+01 : f32
    %13 = vector.broadcast %cst_8 : f32 to vector<8x1xf32>
    %14 = arith.divf %12, %13 : vector<8x1xf32>
    %15 = vector.broadcast %7 : vector<8x1xf32> to vector<8x32xf32>
    %16 = arith.subf %1, %15 : vector<8x32xf32>
    %cst_9 = arith.constant 9.99999974E-6 : f32
    %17 = vector.broadcast %cst_9 : f32 to vector<8x1xf32>
    %18 = arith.addf %14, %17 : vector<8x1xf32>
    %19 = math.rsqrt %18 : vector<8x1xf32>
    %20 = vector.broadcast %19 : vector<8x1xf32> to vector<8x32xf32>
    %21 = arith.mulf %16, %20 : vector<8x32xf32>
    %22 = vector.broadcast %2 : vector<1x32xf32> to vector<8x32xf32>
    %23 = arith.mulf %21, %22 : vector<8x32xf32>
    %24 = vector.broadcast %3 : vector<1x32xf32> to vector<8x32xf32>
    %25 = arith.addf %23, %24 : vector<8x32xf32>
    %c0_10 = arith.constant 0 : index
    %c0_11 = arith.constant 0 : index
    %26 = vector.load %arg4[%c0_10, %c0_11] : memref<32x96xf32, #tpu.memory_space<vmem>>, vector<32x96xf32>
    %cst_12 = arith.constant dense<0.000000e+00> : vector<8x96xf32>
    %27 = tpu.matmul %25, %26, %cst_12 {dimension_numbers = #tpu.dot_dimension_numbers<[1], [0], [0], [1], [0, 0, 1, 1], [], []>} : vector<8x32xf32>, vector<32x96xf32>, vector<8x96xf32> -> vector<8x96xf32>
    %28 = vector.shape_cast %27 : vector<8x96xf32> to vector<1x8x96xf32>
    %29 = tpu.iota {dimensions = array<i32: 0>} : vector<8x8xi32>
    %30 = tpu.iota {dimensions = array<i32: 1>} : vector<8x8xi32>
    %31 = arith.cmpi sle, %30, %29 : vector<8x8xi32>
    %32 = vector.shape_cast %31 : vector<8x8xi1> to vector<1x8x8xi1>
    %33 = vector.extract_strided_slice %28 {offsets = [0, 0, 0], sizes = [1, 8, 8], strides = [1, 1, 1]} : vector<1x8x96xf32> to vector<1x8x8xf32>
    %34 = vector.extract_strided_slice %28 {offsets = [0, 0, 32], sizes = [1, 8, 8], strides = [1, 1, 1]} : vector<1x8x96xf32> to vector<1x8x8xf32>
    %35 = vector.extract_strided_slice %28 {offsets = [0, 0, 64], sizes = [1, 8, 8], strides = [1, 1, 1]} : vector<1x8x96xf32> to vector<1x8x8xf32>
    "tpu.trace_start"() <{level = 10 : i32, message = "bqd,bkd->bqk"}> : () -> ()
    %cst_13 = arith.constant dense<0.000000e+00> : vector<1x8x8xf32>
    %36 = tpu.matmul %33, %34, %cst_13 {dimension_numbers = #tpu.dot_dimension_numbers<[2], [2], [1], [1], [0, 0, 0, 1, 1, 1], [0], [0]>} : vector<1x8x8xf32>, vector<1x8x8xf32>, vector<1x8x8xf32> -> vector<1x8x8xf32>
    %cst_14 = arith.constant -1.000000e+30 : f32
    "tpu.trace_stop"() : () -> ()
    %37 = vector.broadcast %cst_14 : f32 to vector<1x8x8xf32>
    %38 = arith.select %32, %36, %37 : vector<1x8x8xi1>, vector<1x8x8xf32>
    %cst_15 = arith.constant dense<0xFF800000> : vector<1x8xf32>
    %39 = vector.multi_reduction <maximumf>, %38, %cst_15 [2] : vector<1x8x8xf32> to vector<1x8xf32>
    %40 = vector.shape_cast %39 : vector<1x8xf32> to vector<1x8x1xf32>
    %41 = vector.broadcast %40 : vector<1x8x1xf32> to vector<1x8x8xf32>
    %42 = arith.subf %38, %41 : vector<1x8x8xf32>
    %43 = math.exp %42 : vector<1x8x8xf32>
    %cst_16 = arith.constant dense<0.000000e+00> : vector<1x8xf32>
    %44 = vector.multi_reduction <add>, %43, %cst_16 [2] : vector<1x8x8xf32> to vector<1x8xf32>
    %45 = vector.shape_cast %44 : vector<1x8xf32> to vector<1x8x1xf32>
    %46 = tpu.reciprocal %45 : vector<1x8x1xf32> -> vector<1x8x1xf32>
    %47 = vector.broadcast %46 : vector<1x8x1xf32> to vector<1x8x8xf32>
    %48 = arith.mulf %43, %47 : vector<1x8x8xf32>
    "tpu.trace_start"() <{level = 10 : i32, message = "bqk,bkd->bqd"}> : () -> ()
    %cst_17 = arith.constant dense<0.000000e+00> : vector<1x8x8xf32>
    %49 = tpu.matmul %48, %35, %cst_17 {dimension_numbers = #tpu.dot_dimension_numbers<[2], [1], [1], [2], [0, 0, 0, 1, 1, 2], [0], [0]>} : vector<1x8x8xf32>, vector<1x8x8xf32>, vector<1x8x8xf32> -> vector<1x8x8xf32>
    "tpu.trace_stop"() : () -> ()
    %50 = vector.extract_strided_slice %28 {offsets = [0, 0, 8], sizes = [1, 8, 8], strides = [1, 1, 1]} : vector<1x8x96xf32> to vector<1x8x8xf32>
    %51 = vector.extract_strided_slice %28 {offsets = [0, 0, 40], sizes = [1, 8, 8], strides = [1, 1, 1]} : vector<1x8x96xf32> to vector<1x8x8xf32>
    %52 = vector.extract_strided_slice %28 {offsets = [0, 0, 72], sizes = [1, 8, 8], strides = [1, 1, 1]} : vector<1x8x96xf32> to vector<1x8x8xf32>
    "tpu.trace_start"() <{level = 10 : i32, message = "bqd,bkd->bqk"}> : () -> ()
    %cst_18 = arith.constant dense<0.000000e+00> : vector<1x8x8xf32>
    %53 = tpu.matmul %50, %51, %cst_18 {dimension_numbers = #tpu.dot_dimension_numbers<[2], [2], [1], [1], [0, 0, 0, 1, 1, 1], [0], [0]>} : vector<1x8x8xf32>, vector<1x8x8xf32>, vector<1x8x8xf32> -> vector<1x8x8xf32>
    %cst_19 = arith.constant -1.000000e+30 : f32
    "tpu.trace_stop"() : () -> ()
    %54 = vector.broadcast %cst_19 : f32 to vector<1x8x8xf32>
    %55 = arith.select %32, %53, %54 : vector<1x8x8xi1>, vector<1x8x8xf32>
    %cst_20 = arith.constant dense<0xFF800000> : vector<1x8xf32>
    %56 = vector.multi_reduction <maximumf>, %55, %cst_20 [2] : vector<1x8x8xf32> to vector<1x8xf32>
    %57 = vector.shape_cast %56 : vector<1x8xf32> to vector<1x8x1xf32>
    %58 = vector.broadcast %57 : vector<1x8x1xf32> to vector<1x8x8xf32>
    %59 = arith.subf %55, %58 : vector<1x8x8xf32>
    %60 = math.exp %59 : vector<1x8x8xf32>
    %cst_21 = arith.constant dense<0.000000e+00> : vector<1x8xf32>
    %61 = vector.multi_reduction <add>, %60, %cst_21 [2] : vector<1x8x8xf32> to vector<1x8xf32>
    %62 = vector.shape_cast %61 : vector<1x8xf32> to vector<1x8x1xf32>
    %63 = tpu.reciprocal %62 : vector<1x8x1xf32> -> vector<1x8x1xf32>
    %64 = vector.broadcast %63 : vector<1x8x1xf32> to vector<1x8x8xf32>
    %65 = arith.mulf %60, %64 : vector<1x8x8xf32>
    "tpu.trace_start"() <{level = 10 : i32, message = "bqk,bkd->bqd"}> : () -> ()
    %cst_22 = arith.constant dense<0.000000e+00> : vector<1x8x8xf32>
    %66 = tpu.matmul %65, %52, %cst_22 {dimension_numbers = #tpu.dot_dimension_numbers<[2], [1], [1], [2], [0, 0, 0, 1, 1, 2], [0], [0]>} : vector<1x8x8xf32>, vector<1x8x8xf32>, vector<1x8x8xf32> -> vector<1x8x8xf32>
    "tpu.trace_stop"() : () -> ()
    %67 = vector.extract_strided_slice %28 {offsets = [0, 0, 16], sizes = [1, 8, 8], strides = [1, 1, 1]} : vector<1x8x96xf32> to vector<1x8x8xf32>
    %68 = vector.extract_strided_slice %28 {offsets = [0, 0, 48], sizes = [1, 8, 8], strides = [1, 1, 1]} : vector<1x8x96xf32> to vector<1x8x8xf32>
    %69 = vector.extract_strided_slice %28 {offsets = [0, 0, 80], sizes = [1, 8, 8], strides = [1, 1, 1]} : vector<1x8x96xf32> to vector<1x8x8xf32>
    "tpu.trace_start"() <{level = 10 : i32, message = "bqd,bkd->bqk"}> : () -> ()
    %cst_23 = arith.constant dense<0.000000e+00> : vector<1x8x8xf32>
    %70 = tpu.matmul %67, %68, %cst_23 {dimension_numbers = #tpu.dot_dimension_numbers<[2], [2], [1], [1], [0, 0, 0, 1, 1, 1], [0], [0]>} : vector<1x8x8xf32>, vector<1x8x8xf32>, vector<1x8x8xf32> -> vector<1x8x8xf32>
    %cst_24 = arith.constant -1.000000e+30 : f32
    "tpu.trace_stop"() : () -> ()
    %71 = vector.broadcast %cst_24 : f32 to vector<1x8x8xf32>
    %72 = arith.select %32, %70, %71 : vector<1x8x8xi1>, vector<1x8x8xf32>
    %cst_25 = arith.constant dense<0xFF800000> : vector<1x8xf32>
    %73 = vector.multi_reduction <maximumf>, %72, %cst_25 [2] : vector<1x8x8xf32> to vector<1x8xf32>
    %74 = vector.shape_cast %73 : vector<1x8xf32> to vector<1x8x1xf32>
    %75 = vector.broadcast %74 : vector<1x8x1xf32> to vector<1x8x8xf32>
    %76 = arith.subf %72, %75 : vector<1x8x8xf32>
    %77 = math.exp %76 : vector<1x8x8xf32>
    %cst_26 = arith.constant dense<0.000000e+00> : vector<1x8xf32>
    %78 = vector.multi_reduction <add>, %77, %cst_26 [2] : vector<1x8x8xf32> to vector<1x8xf32>
    %79 = vector.shape_cast %78 : vector<1x8xf32> to vector<1x8x1xf32>
    %80 = tpu.reciprocal %79 : vector<1x8x1xf32> -> vector<1x8x1xf32>
    %81 = vector.broadcast %80 : vector<1x8x1xf32> to vector<1x8x8xf32>
    %82 = arith.mulf %77, %81 : vector<1x8x8xf32>
    "tpu.trace_start"() <{level = 10 : i32, message = "bqk,bkd->bqd"}> : () -> ()
    %cst_27 = arith.constant dense<0.000000e+00> : vector<1x8x8xf32>
    %83 = tpu.matmul %82, %69, %cst_27 {dimension_numbers = #tpu.dot_dimension_numbers<[2], [1], [1], [2], [0, 0, 0, 1, 1, 2], [0], [0]>} : vector<1x8x8xf32>, vector<1x8x8xf32>, vector<1x8x8xf32> -> vector<1x8x8xf32>
    "tpu.trace_stop"() : () -> ()
    %84 = vector.extract_strided_slice %28 {offsets = [0, 0, 24], sizes = [1, 8, 8], strides = [1, 1, 1]} : vector<1x8x96xf32> to vector<1x8x8xf32>
    %85 = vector.extract_strided_slice %28 {offsets = [0, 0, 56], sizes = [1, 8, 8], strides = [1, 1, 1]} : vector<1x8x96xf32> to vector<1x8x8xf32>
    %86 = vector.extract_strided_slice %28 {offsets = [0, 0, 88], sizes = [1, 8, 8], strides = [1, 1, 1]} : vector<1x8x96xf32> to vector<1x8x8xf32>
    "tpu.trace_start"() <{level = 10 : i32, message = "bqd,bkd->bqk"}> : () -> ()
    %cst_28 = arith.constant dense<0.000000e+00> : vector<1x8x8xf32>
    %87 = tpu.matmul %84, %85, %cst_28 {dimension_numbers = #tpu.dot_dimension_numbers<[2], [2], [1], [1], [0, 0, 0, 1, 1, 1], [0], [0]>} : vector<1x8x8xf32>, vector<1x8x8xf32>, vector<1x8x8xf32> -> vector<1x8x8xf32>
    %cst_29 = arith.constant -1.000000e+30 : f32
    "tpu.trace_stop"() : () -> ()
    %88 = vector.broadcast %cst_29 : f32 to vector<1x8x8xf32>
    %89 = arith.select %32, %87, %88 : vector<1x8x8xi1>, vector<1x8x8xf32>
    %cst_30 = arith.constant dense<0xFF800000> : vector<1x8xf32>
    %90 = vector.multi_reduction <maximumf>, %89, %cst_30 [2] : vector<1x8x8xf32> to vector<1x8xf32>
    %91 = vector.shape_cast %90 : vector<1x8xf32> to vector<1x8x1xf32>
    %92 = vector.broadcast %91 : vector<1x8x1xf32> to vector<1x8x8xf32>
    %93 = arith.subf %89, %92 : vector<1x8x8xf32>
    %94 = math.exp %93 : vector<1x8x8xf32>
    %cst_31 = arith.constant dense<0.000000e+00> : vector<1x8xf32>
    %95 = vector.multi_reduction <add>, %94, %cst_31 [2] : vector<1x8x8xf32> to vector<1x8xf32>
    %96 = vector.shape_cast %95 : vector<1x8xf32> to vector<1x8x1xf32>
    %97 = tpu.reciprocal %96 : vector<1x8x1xf32> -> vector<1x8x1xf32>
    %98 = vector.broadcast %97 : vector<1x8x1xf32> to vector<1x8x8xf32>
    %99 = arith.mulf %94, %98 : vector<1x8x8xf32>
    "tpu.trace_start"() <{level = 10 : i32, message = "bqk,bkd->bqd"}> : () -> ()
    %cst_32 = arith.constant dense<0.000000e+00> : vector<1x8x8xf32>
    %100 = tpu.matmul %99, %86, %cst_32 {dimension_numbers = #tpu.dot_dimension_numbers<[2], [1], [1], [2], [0, 0, 0, 1, 1, 2], [0], [0]>} : vector<1x8x8xf32>, vector<1x8x8xf32>, vector<1x8x8xf32> -> vector<1x8x8xf32>
    "tpu.trace_stop"() : () -> ()
    %101 = tpu.concatenate %49, %66, %83, %100 in 2 : vector<1x8x8xf32>, vector<1x8x8xf32>, vector<1x8x8xf32>, vector<1x8x8xf32> -> vector<1x8x32xf32>
    %102 = vector.shape_cast %101 : vector<1x8x32xf32> to vector<8x32xf32>
    %c0_33 = arith.constant 0 : index
    %c0_34 = arith.constant 0 : index
    %103 = vector.load %arg5[%c0_33, %c0_34] : memref<32x32xf32, #tpu.memory_space<vmem>>, vector<32x32xf32>
    %cst_35 = arith.constant dense<0.000000e+00> : vector<8x32xf32>
    %104 = tpu.matmul %102, %103, %cst_35 {dimension_numbers = #tpu.dot_dimension_numbers<[1], [0], [0], [1], [0, 0, 1, 1], [], []>} : vector<8x32xf32>, vector<32x32xf32>, vector<8x32xf32> -> vector<8x32xf32>
    %c0_36 = arith.constant 0 : index
    %c0_37 = arith.constant 0 : index
    %105 = vector.load %arg6[%c0_36, %c0_37] : memref<1x32xf32, #tpu.memory_space<vmem>>, vector<1x32xf32>
    %106 = vector.broadcast %105 : vector<1x32xf32> to vector<8x32xf32>
    %107 = arith.addf %104, %106 : vector<8x32xf32>
    %108 = arith.addf %1, %107 : vector<8x32xf32>
    %c0_38 = arith.constant 0 : index
    %c0_39 = arith.constant 0 : index
    %109 = vector.load %arg7[%c0_38, %c0_39] : memref<1x32xf32, #tpu.memory_space<vmem>>, vector<1x32xf32>
    %c0_40 = arith.constant 0 : index
    %c0_41 = arith.constant 0 : index
    %110 = vector.load %arg8[%c0_40, %c0_41] : memref<1x32xf32, #tpu.memory_space<vmem>>, vector<1x32xf32>
    %cst_42 = arith.constant dense<0.000000e+00> : vector<8xf32>
    %111 = vector.multi_reduction <add>, %108, %cst_42 [1] : vector<8x32xf32> to vector<8xf32>
    %112 = vector.shape_cast %111 : vector<8xf32> to vector<8x1xf32>
    %cst_43 = arith.constant 3.200000e+01 : f32
    %113 = vector.broadcast %cst_43 : f32 to vector<8x1xf32>
    %114 = arith.divf %112, %113 : vector<8x1xf32>
    %115 = vector.broadcast %114 : vector<8x1xf32> to vector<8x32xf32>
    %116 = arith.subf %108, %115 : vector<8x32xf32>
    %117 = arith.mulf %116, %116 : vector<8x32xf32>
    %cst_44 = arith.constant dense<0.000000e+00> : vector<8xf32>
    %118 = vector.multi_reduction <add>, %117, %cst_44 [1] : vector<8x32xf32> to vector<8xf32>
    %119 = vector.shape_cast %118 : vector<8xf32> to vector<8x1xf32>
    %cst_45 = arith.constant 3.200000e+01 : f32
    %120 = vector.broadcast %cst_45 : f32 to vector<8x1xf32>
    %121 = arith.divf %119, %120 : vector<8x1xf32>
    %122 = vector.broadcast %114 : vector<8x1xf32> to vector<8x32xf32>
    %123 = arith.subf %108, %122 : vector<8x32xf32>
    %cst_46 = arith.constant 9.99999974E-6 : f32
    %124 = vector.broadcast %cst_46 : f32 to vector<8x1xf32>
    %125 = arith.addf %121, %124 : vector<8x1xf32>
    %126 = math.rsqrt %125 : vector<8x1xf32>
    %127 = vector.broadcast %126 : vector<8x1xf32> to vector<8x32xf32>
    %128 = arith.mulf %123, %127 : vector<8x32xf32>
    %129 = vector.broadcast %109 : vector<1x32xf32> to vector<8x32xf32>
    %130 = arith.mulf %128, %129 : vector<8x32xf32>
    %131 = vector.broadcast %110 : vector<1x32xf32> to vector<8x32xf32>
    %132 = arith.addf %130, %131 : vector<8x32xf32>
    %c0_47 = arith.constant 0 : index
    %c0_48 = arith.constant 0 : index
    %133 = vector.load %arg9[%c0_47, %c0_48] : memref<32x128xf32, #tpu.memory_space<vmem>>, vector<32x128xf32>
    %cst_49 = arith.constant dense<0.000000e+00> : vector<8x128xf32>
    %134 = tpu.matmul %132, %133, %cst_49 {dimension_numbers = #tpu.dot_dimension_numbers<[1], [0], [0], [1], [0, 0, 1, 1], [], []>} : vector<8x32xf32>, vector<32x128xf32>, vector<8x128xf32> -> vector<8x128xf32>
    %c0_50 = arith.constant 0 : index
    %c0_51 = arith.constant 0 : index
    %135 = vector.load %arg10[%c0_50, %c0_51] : memref<1x128xf32, #tpu.memory_space<vmem>>, vector<1x128xf32>
    %136 = vector.broadcast %135 : vector<1x128xf32> to vector<8x128xf32>
    %137 = arith.addf %134, %136 : vector<8x128xf32>
    %cst_52 = arith.constant 0.000000e+00 : f32
    %138 = vector.broadcast %cst_52 : f32 to vector<8x128xf32>
    %139 = arith.maximumf %137, %138 : vector<8x128xf32>
    %c0_53 = arith.constant 0 : index
    %c0_54 = arith.constant 0 : index
    %140 = vector.load %arg11[%c0_53, %c0_54] : memref<128x32xf32, #tpu.memory_space<vmem>>, vector<128x32xf32>
    %cst_55 = arith.constant dense<0.000000e+00> : vector<8x32xf32>
    %141 = tpu.matmul %139, %140, %cst_55 {dimension_numbers = #tpu.dot_dimension_numbers<[1], [0], [0], [1], [0, 0, 1, 1], [], []>} : vector<8x128xf32>, vector<128x32xf32>, vector<8x32xf32> -> vector<8x32xf32>
    %c0_56 = arith.constant 0 : index
    %c0_57 = arith.constant 0 : index
    %142 = vector.load %arg12[%c0_56, %c0_57] : memref<1x32xf32, #tpu.memory_space<vmem>>, vector<1x32xf32>
    %143 = vector.broadcast %142 : vector<1x32xf32> to vector<8x32xf32>
    %144 = arith.addf %141, %143 : vector<8x32xf32>
    %145 = arith.addf %108, %144 : vector<8x32xf32>
    %146 = vector.shape_cast %145 : vector<8x32xf32> to vector<1x8x32xf32>
    %c0_58 = arith.constant 0 : index
    %c0_59 = arith.constant 0 : index
    %c0_60 = arith.constant 0 : index
    %147 = vector.load %arg13[%c0_58, %c0_59, %c0_60] : memref<1x8x32xf32, #tpu.memory_space<vmem>>, vector<1x8x32xf32>
    tpu.vector_store %arg13[%c0_58, %c0_59, %c0_60], %146 {strides = array<i32>} : memref<1x8x32xf32, #tpu.memory_space<vmem>>, vector<1x8x32xf32>,
    return
  }
  func.func @transform_0(%arg0: i32) -> (i32, i32, i32) {
    %c0_i32 = arith.constant 0 : i32
    %c0_i32_0 = arith.constant 0 : i32
    %c0_i32_1 = arith.constant 0 : i32
    return %arg0, %c0_i32, %c0_i32_0 : i32, i32, i32
  }
  func.func @transform_1(%arg0: i32) -> (i32, i32) {
    %c0_i32 = arith.constant 0 : i32
    %c0_i32_0 = arith.constant 0 : i32
    %c0_i32_1 = arith.constant 0 : i32
    return %c0_i32, %c0_i32_0 : i32, i32
  }
  func.func @transform_2(%arg0: i32) -> (i32, i32) {
    %c0_i32 = arith.constant 0 : i32
    %c0_i32_0 = arith.constant 0 : i32
    %c0_i32_1 = arith.constant 0 : i32
    return %c0_i32, %c0_i32_0 : i32, i32
  }
  func.func @transform_3(%arg0: i32) -> (i32, i32) {
    %c0_i32 = arith.constant 0 : i32
    %c0_i32_0 = arith.constant 0 : i32
    %c0_i32_1 = arith.constant 0 : i32
    return %c0_i32, %c0_i32_0 : i32, i32
  }
  func.func @transform_4(%arg0: i32) -> (i32, i32) {
    %c0_i32 = arith.constant 0 : i32
    %c0_i32_0 = arith.constant 0 : i32
    %c0_i32_1 = arith.constant 0 : i32
    return %c0_i32, %c0_i32_0 : i32, i32
  }
  func.func @transform_5(%arg0: i32) -> (i32, i32) {
    %c0_i32 = arith.constant 0 : i32
    %c0_i32_0 = arith.constant 0 : i32
    %c0_i32_1 = arith.constant 0 : i32
    return %c0_i32, %c0_i32_0 : i32, i32
  }
  func.func @transform_6(%arg0: i32) -> (i32, i32) {
    %c0_i32 = arith.constant 0 : i32
    %c0_i32_0 = arith.constant 0 : i32
    %c0_i32_1 = arith.constant 0 : i32
    return %c0_i32, %c0_i32_0 : i32, i32
  }
  func.func @transform_7(%arg0: i32) -> (i32, i32) {
    %c0_i32 = arith.constant 0 : i32
    %c0_i32_0 = arith.constant 0 : i32
    %c0_i32_1 = arith.constant 0 : i32
    return %c0_i32, %c0_i32_0 : i32, i32
  }
  func.func @transform_8(%arg0: i32) -> (i32, i32) {
    %c0_i32 = arith.constant 0 : i32
    %c0_i32_0 = arith.constant 0 : i32
    %c0_i32_1 = arith.constant 0 : i32
    return %c0_i32, %c0_i32_0 : i32, i32
  }
  func.func @transform_9(%arg0: i32) -> (i32, i32) {
    %c0_i32 = arith.constant 0 : i32
    %c0_i32_0 = arith.constant 0 : i32
    %c0_i32_1 = arith.constant 0 : i32
    return %c0_i32, %c0_i32_0 : i32, i32
  }
  func.func @transform_10(%arg0: i32) -> (i32, i32) {
    %c0_i32 = arith.constant 0 : i32
    %c0_i32_0 = arith.constant 0 : i32
    %c0_i32_1 = arith.constant 0 : i32
    return %c0_i32, %c0_i32_0 : i32, i32
  }
  func.func @transform_11(%arg0: i32) -> (i32, i32) {
    %c0_i32 = arith.constant 0 : i32
    %c0_i32_0 = arith.constant 0 : i32
    %c0_i32_1 = arith.constant 0 : i32
    return %c0_i32, %c0_i32_0 : i32, i32
  }
  func.func @transform_12(%arg0: i32) -> (i32, i32, i32) {
    %c0_i32 = arith.constant 0 : i32
    %c0_i32_0 = arith.constant 0 : i32
    %c0_i32_1 = arith.constant 0 : i32
    return %arg0, %c0_i32, %c0_i32_0 : i32, i32, i32
  }
}

</mosaic_0001>

<llo_original>
// kernel: tpu_custom_call.1
$region0: #{tpu_custom_call.1}
  #allocation0 [shape = 'u32[]', space=smem, size = 0x4, offset = 0x4, fixed_abs, tag = 'smem constant byte address 0x4 - core index']
  #allocation1 [shape = 'u32[144,128]{1,0:T(1,128)}', space=vmem, size = 0x12000, scoped, tag = 'internal scratch']
  %s0 = inlined_call_operand.vmem [shape: f32[2,8,32], index: 0, kind: input, shape index: {}]
  %s1 = inlined_call_operand.vmem [shape: f32[1,32], index: 1, kind: input, shape index: {}]
  %s2 = inlined_call_operand.vmem [shape: f32[1,32], index: 2, kind: input, shape index: {}]
  %s3 = inlined_call_operand.vmem [shape: f32[32,96], index: 3, kind: input, shape index: {}]
  %s4 = inlined_call_operand.vmem [shape: f32[32,32], index: 4, kind: input, shape index: {}]
  %s5 = inlined_call_operand.vmem [shape: f32[1,32], index: 5, kind: input, shape index: {}]
  %s6 = inlined_call_operand.vmem [shape: f32[1,32], index: 6, kind: input, shape index: {}]
  %s7 = inlined_call_operand.vmem [shape: f32[1,32], index: 7, kind: input, shape index: {}]
  %s8 = inlined_call_operand.vmem [shape: f32[32,128], index: 8, kind: input, shape index: {}]
  %s9 = inlined_call_operand.vmem [shape: f32[1,128], index: 9, kind: input, shape index: {}]
  %s10 = inlined_call_operand.vmem [shape: f32[128,32], index: 10, kind: input, shape index: {}]
  %s11 = inlined_call_operand.vmem [shape: f32[1,32], index: 11, kind: input, shape index: {}]
  %s12 = inlined_call_operand.hbm [shape: f32[2,8,32], index: 12, kind: output, shape index: {}]
  %s13 = sld [smem:[#allocation0]]
  $region81: #{tpu_custom_call.1} parent=0
    _
  %s15 = ssub.s32 1, %s13
  %s16 = scalar_select 0, %s15, %s13
  $region1: #{tpu_custom_call.1} parent=0
    #allocation2 [shape = 'u8[8192]{0}', space=vmem, size = 0x2000, scoped, tag = 'output window, operand 0']
    #allocation3 [shape = 's32[2]{0}', space=sflag, size = 0x8, scoped, tag = 'scoped memory for tpu_custom_call.1']
    %17 = vsyncpa [#allocation3], 0
    %s18 = scalar_lea.sflag [#allocation3], 1
    %19 = vsyncpa %s18, 0
    loop: start=0, step=1, limit=4
    $region2: #{tpu_custom_call.1} parent=1 // loop_pre_header
      _
    $region3: #{tpu_custom_call.1} parent=1 // loop_header
      %s21 = sphi 0, %s25
      %p22 = scmp.ge.s32.totalorder %s21, 4
      %s31 = sphi 0, %s33
      %s34 = sphi 0, %s31
      %s35 = sphi 0, %s34
      %s51 = sphi 0, %s35
      %s55 = sphi 0, %s55
      %s57 = sphi 0, %s55
      %s58 = sphi 0, %s57
      %s72 = sphi 0, %s58
      %s76 = sphi 0, %s76
      %s78 = sphi 0, %s76
      %s79 = sphi 0, %s78
      %s93 = sphi 0, %s79
      %s97 = sphi 0, %s97
      %s99 = sphi 0, %s97
      %s100 = sphi 0, %s99
      %s114 = sphi 0, %s100
      %s118 = sphi 0, %s118
      %s120 = sphi 0, %s118
      %s121 = sphi 0, %s120
      %s135 = sphi 0, %s121
      %s139 = sphi 0, %s139
      %s141 = sphi 0, %s139
      %s142 = sphi 0, %s141
      %s156 = sphi 0, %s142
      %s160 = sphi 0, %s160
      %s162 = sphi 0, %s160
      %s163 = sphi 0, %s162
      %s177 = sphi 0, %s163
      %s181 = sphi 0, %s181
      %s183 = sphi 0, %s181
      %s184 = sphi 0, %s183
      %s198 = sphi 0, %s184
      %s202 = sphi 0, %s202
      %s204 = sphi 0, %s202
      %s205 = sphi 0, %s204
      %s219 = sphi 0, %s205
      %s223 = sphi 0, %s223
      %s225 = sphi 0, %s223
      %s226 = sphi 0, %s225
      %s240 = sphi 0, %s226
      %s244 = sphi 0, %s244
      %s246 = sphi 0, %s244
      %s247 = sphi 0, %s246
      %s261 = sphi 0, %s247
      %s265 = sphi 0, %s265
      %s267 = sphi 0, %s265
      %s268 = sphi 0, %s267
      %s282 = sphi 0, %s268
      %s288 = sphi 0, %s290
      %s291 = sphi 0, %s288
      %s292 = sphi 0, %s291
      %s308 = sphi 0, %s292
    $region4: #{tpu_custom_call.1} parent=1 // loop_header_branch
      %24 = sbr.rel (%p22) target = $region8
    $region5: #{tpu_custom_call.1} parent=1 // loop_body
      %s26 = ssub.s32 %s21, 1
      %s27 = ssub.s32 %s21, 2
      %s28 = sadd.s32 %s21, 1
      %s29 = ssub.s32 %s21, %s28
      %p30 = scmp.eq.s32.totalorder %s29, 0
      %s32 = sadd.s32 %s31, 1
      %s33 = scalar_select %p30, %s31, %s32
      %p36 = pneg %p30
      %p37 = scmp.eq.s32.totalorder %s21, 1
      %p38 = por %p36, %p37
      %p39 = scmp.ne.s32.totalorder %s31, %s34
      %p40 = scmp.eq.s32.totalorder %s21, 0
      %p41 = por %p39, %p40
      %p42 = scmp.ne.s32.totalorder %s31, %s34
      %p43 = scmp.eq.s32.totalorder %s26, 1
      %p44 = por %p42, %p43
      %p45 = scmp.ne.s32.totalorder %s34, %s35
      %p46 = scmp.eq.s32.totalorder %s26, 0
      %p47 = por %p45, %p46
      %p48 = scmp.ne.s32.totalorder %s34, %s35
      %p49 = scmp.eq.s32.totalorder %s27, 1
      %p50 = por %p48, %p49
      %p52 = scmp.ne.s32.totalorder %s35, %s51
      %p53 = scmp.eq.s32.totalorder %s27, 0
      %p54 = por %p52, %p53
      %s56 = sadd.s32 %s55, 1
      %p59 = scmp.eq.s32.totalorder %s21, 1
      %p60 = scmp.ne.s32.totalorder %s55, %s57
      %p61 = scmp.eq.s32.totalorder %s21, 0
      %p62 = por %p60, %p61
      %p63 = scmp.ne.s32.totalorder %s55, %s57
      %p64 = scmp.eq.s32.totalorder %s26, 1
      %p65 = por %p63, %p64
      %p66 = scmp.ne.s32.totalorder %s57, %s58
      %p67 = scmp.eq.s32.totalorder %s26, 0
      %p68 = por %p66, %p67
      %p69 = scmp.ne.s32.totalorder %s57, %s58
      %p70 = scmp.eq.s32.totalorder %s27, 1
      %p71 = por %p69, %p70
      %p73 = scmp.ne.s32.totalorder %s58, %s72
      %p74 = scmp.eq.s32.totalorder %s27, 0
      %p75 = por %p73, %p74
      %s77 = sadd.s32 %s76, 1
      %p80 = scmp.eq.s32.totalorder %s21, 1
      %p81 = scmp.ne.s32.totalorder %s76, %s78
      %p82 = scmp.eq.s32.totalorder %s21, 0
      %p83 = por %p81, %p82
      %p84 = scmp.ne.s32.totalorder %s76, %s78
      %p85 = scmp.eq.s32.totalorder %s26, 1
      %p86 = por %p84, %p85
      %p87 = scmp.ne.s32.totalorder %s78, %s79
      %p88 = scmp.eq.s32.totalorder %s26, 0
      %p89 = por %p87, %p88
      %p90 = scmp.ne.s32.totalorder %s78, %s79
      %p91 = scmp.eq.s32.totalorder %s27, 1
      %p92 = por %p90, %p91
      %p94 = scmp.ne.s32.totalorder %s79, %s93
      %p95 = scmp.eq.s32.totalorder %s27, 0
      %p96 = por %p94, %p95
      %s98 = sadd.s32 %s97, 1
      %p101 = scmp.eq.s32.totalorder %s21, 1
      %p102 = scmp.ne.s32.totalorder %s97, %s99
      %p103 = scmp.eq.s32.totalorder %s21, 0
      %p104 = por %p102, %p103
      %p105 = scmp.ne.s32.totalorder %s97, %s99
      %p106 = scmp.eq.s32.totalorder %s26, 1
      %p107 = por %p105, %p106
      %p108 = scmp.ne.s32.totalorder %s99, %s100
      %p109 = scmp.eq.s32.totalorder %s26, 0
      %p110 = por %p108, %p109
      %p111 = scmp.ne.s32.totalorder %s99, %s100
      %p112 = scmp.eq.s32.totalorder %s27, 1
      %p113 = por %p111, %p112
      %p115 = scmp.ne.s32.totalorder %s100, %s114
      %p116 = scmp.eq.s32.totalorder %s27, 0
      %p117 = por %p115, %p116
      %s119 = sadd.s32 %s118, 1
      %p122 = scmp.eq.s32.totalorder %s21, 1
      %p123 = scmp.ne.s32.totalorder %s118, %s120
      %p124 = scmp.eq.s32.totalorder %s21, 0
      %p125 = por %p123, %p124
      %p126 = scmp.ne.s32.totalorder %s118, %s120
      %p127 = scmp.eq.s32.totalorder %s26, 1
      %p128 = por %p126, %p127
      %p129 = scmp.ne.s32.totalorder %s120, %s121
      %p130 = scmp.eq.s32.totalorder %s26, 0
      %p131 = por %p129, %p130
      %p132 = scmp.ne.s32.totalorder %s120, %s121
      %p133 = scmp.eq.s32.totalorder %s27, 1
      %p134 = por %p132, %p133
      %p136 = scmp.ne.s32.totalorder %s121, %s135
      %p137 = scmp.eq.s32.totalorder %s27, 0
      %p138 = por %p136, %p137
      %s140 = sadd.s32 %s139, 1
      %p143 = scmp.eq.s32.totalorder %s21, 1
      %p144 = scmp.ne.s32.totalorder %s139, %s141
      %p145 = scmp.eq.s32.totalorder %s21, 0
      %p146 = por %p144, %p145
      %p147 = scmp.ne.s32.totalorder %s139, %s141
      %p148 = scmp.eq.s32.totalorder %s26, 1
      %p149 = por %p147, %p148
      %p150 = scmp.ne.s32.totalorder %s141, %s142
      %p151 = scmp.eq.s32.totalorder %s26, 0
      %p152 = por %p150, %p151
      %p153 = scmp.ne.s32.totalorder %s141, %s142
      %p154 = scmp.eq.s32.totalorder %s27, 1
      %p155 = por %p153, %p154
      %p157 = scmp.ne.s32.totalorder %s142, %s156
      %p158 = scmp.eq.s32.totalorder %s27, 0
      %p159 = por %p157, %p158
      %s161 = sadd.s32 %s160, 1
      %p164 = scmp.eq.s32.totalorder %s21, 1
      %p165 = scmp.ne.s32.totalorder %s160, %s162
      %p166 = scmp.eq.s32.totalorder %s21, 0
      %p167 = por %p165, %p166
      %p168 = scmp.ne.s32.totalorder %s160, %s162
      %p169 = scmp.eq.s32.totalorder %s26, 1
      %p170 = por %p168, %p169
      %p171 = scmp.ne.s32.totalorder %s162, %s163
      %p172 = scmp.eq.s32.totalorder %s26, 0
      %p173 = por %p171, %p172
      %p174 = scmp.ne.s32.totalorder %s162, %s163
      %p175 = scmp.eq.s32.totalorder %s27, 1
      %p176 = por %p174, %p175
      %p178 = scmp.ne.s32.totalorder %s163, %s177
      %p179 = scmp.eq.s32.totalorder %s27, 0
      %p180 = por %p178, %p179
      %s182 = sadd.s32 %s181, 1
      %p185 = scmp.eq.s32.totalorder %s21, 1
      %p186 = scmp.ne.s32.totalorder %s181, %s183
      %p187 = scmp.eq.s32.totalorder %s21, 0
      %p188 = por %p186, %p187
      %p189 = scmp.ne.s32.totalorder %s181, %s183
      %p190 = scmp.eq.s32.totalorder %s26, 1
      %p191 = por %p189, %p190
      %p192 = scmp.ne.s32.totalorder %s183, %s184
      %p193 = scmp.eq.s32.totalorder %s26, 0
      %p194 = por %p192, %p193
      %p195 = scmp.ne.s32.totalorder %s183, %s184
      %p196 = scmp.eq.s32.totalorder %s27, 1
      %p197 = por %p195, %p196
      %p199 = scmp.ne.s32.totalorder %s184, %s198
      %p200 = scmp.eq.s32.totalorder %s27, 0
      %p201 = por %p199, %p200
      %s203 = sadd.s32 %s202, 1
      %p206 = scmp.eq.s32.totalorder %s21, 1
      %p207 = scmp.ne.s32.totalorder %s202, %s204
      %p208 = scmp.eq.s32.totalorder %s21, 0
      %p209 = por %p207, %p208
      %p210 = scmp.ne.s32.totalorder %s202, %s204
      %p211 = scmp.eq.s32.totalorder %s26, 1
      %p212 = por %p210, %p211
      %p213 = scmp.ne.s32.totalorder %s204, %s205
      %p214 = scmp.eq.s32.totalorder %s26, 0
      %p215 = por %p213, %p214
      %p216 = scmp.ne.s32.totalorder %s204, %s205
      %p217 = scmp.eq.s32.totalorder %s27, 1
      %p218 = por %p216, %p217
      %p220 = scmp.ne.s32.totalorder %s205, %s219
      %p221 = scmp.eq.s32.totalorder %s27, 0
      %p222 = por %p220, %p221
      %s224 = sadd.s32 %s223, 1
      %p227 = scmp.eq.s32.totalorder %s21, 1
      %p228 = scmp.ne.s32.totalorder %s223, %s225
      %p229 = scmp.eq.s32.totalorder %s21, 0
      %p230 = por %p228, %p229
      %p231 = scmp.ne.s32.totalorder %s223, %s225
      %p232 = scmp.eq.s32.totalorder %s26, 1
      %p233 = por %p231, %p232
      %p234 = scmp.ne.s32.totalorder %s225, %s226
      %p235 = scmp.eq.s32.totalorder %s26, 0
      %p236 = por %p234, %p235
      %p237 = scmp.ne.s32.totalorder %s225, %s226
      %p238 = scmp.eq.s32.totalorder %s27, 1
      %p239 = por %p237, %p238
      %p241 = scmp.ne.s32.totalorder %s226, %s240
      %p242 = scmp.eq.s32.totalorder %s27, 0
      %p243 = por %p241, %p242
      %s245 = sadd.s32 %s244, 1
      %p248 = scmp.eq.s32.totalorder %s21, 1
      %p249 = scmp.ne.s32.totalorder %s244, %s246
      %p250 = scmp.eq.s32.totalorder %s21, 0
      %p251 = por %p249, %p250
      %p252 = scmp.ne.s32.totalorder %s244, %s246
      %p253 = scmp.eq.s32.totalorder %s26, 1
      %p254 = por %p252, %p253
      %p255 = scmp.ne.s32.totalorder %s246, %s247
      %p256 = scmp.eq.s32.totalorder %s26, 0
      %p257 = por %p255, %p256
      %p258 = scmp.ne.s32.totalorder %s246, %s247
      %p259 = scmp.eq.s32.totalorder %s27, 1
      %p260 = por %p258, %p259
      %p262 = scmp.ne.s32.totalorder %s247, %s261
      %p263 = scmp.eq.s32.totalorder %s27, 0
      %p264 = por %p262, %p263
      %s266 = sadd.s32 %s265, 1
      %p269 = scmp.eq.s32.totalorder %s21, 1
      %p270 = scmp.ne.s32.totalorder %s265, %s267
      %p271 = scmp.eq.s32.totalorder %s21, 0
      %p272 = por %p270, %p271
      %p273 = scmp.ne.s32.totalorder %s265, %s267
      %p274 = scmp.eq.s32.totalorder %s26, 1
      %p275 = por %p273, %p274
      %p276 = scmp.ne.s32.totalorder %s267, %s268
      %p277 = scmp.eq.s32.totalorder %s26, 0
      %p278 = por %p276, %p277
      %p279 = scmp.ne.s32.totalorder %s267, %s268
      %p280 = scmp.eq.s32.totalorder %s27, 1
      %p281 = por %p279, %p280
      %p283 = scmp.ne.s32.totalorder %s268, %s282
      %p284 = scmp.eq.s32.totalorder %s27, 0
      %p285 = por %p283, %p284
      %s286 = ssub.s32 %s21, %s28
      %p287 = scmp.eq.s32.totalorder %s286, 0
      %s289 = sadd.s32 %s288, 1
      %s290 = scalar_select %p287, %s288, %s289
      %p293 = pneg %p287
      %p294 = scmp.eq.s32.totalorder %s21, 1
      %p295 = por %p293, %p294
      %p296 = scmp.ne.s32.totalorder %s288, %s291
      %p297 = scmp.eq.s32.totalorder %s21, 0
      %p298 = por %p296, %p297
      %p299 = scmp.ne.s32.totalorder %s288, %s291
      %p300 = scmp.eq.s32.totalorder %s26, 1
      %p301 = por %p299, %p300
      %p302 = scmp.ne.s32.totalorder %s291, %s292
      %p303 = scmp.eq.s32.totalorder %s26, 0
      %p304 = por %p302, %p303
      %p305 = scmp.ne.s32.totalorder %s291, %s292
      %p306 = scmp.eq.s32.totalorder %s27, 1
      %p307 = por %p305, %p306
      %p309 = scmp.ne.s32.totalorder %s292, %s308
      %p310 = scmp.eq.s32.totalorder %s27, 0
      %p311 = por %p309, %p310
      %p312 = scmp.le.s32.totalorder 1, %s21
      %p313 = scmp.lt.s32.totalorder %s21, 3
      %p314 = pnand %p312, %p313
      %p315 = pneg %p314
      // Predicated region
      $region9: #{tpu_custom_call.1} parent=5 // pred_check
        _
      $region10: #{tpu_custom_call.1} parent=5 // pred_check_branch
        %317 = sbr.rel (%p314) target = $region12
      $region11: #{tpu_custom_call.1} parent=5 // pred_region
        %s318 = ssub.s32 %s21, 1
        // Predicated region
        $region13: #{tpu_custom_call.1} parent=11 // pred_check
          %p319 = pneg %p68
        $region14: #{tpu_custom_call.1} parent=11 // pred_check_branch
          %321 = sbr.rel (%p319) target = $region16
        $region15: #{tpu_custom_call.1} parent=11 // pred_region
          _
        $region16: #{tpu_custom_call.1} parent=11 // pred_fallthru
          _
        // Predicated region
        $region17: #{tpu_custom_call.1} parent=11 // pred_check
          %p322 = pneg %p89
        $region18: #{tpu_custom_call.1} parent=11 // pred_check_branch
          %324 = sbr.rel (%p322) target = $region20
        $region19: #{tpu_custom_call.1} parent=11 // pred_region
          _
        $region20: #{tpu_custom_call.1} parent=11 // pred_fallthru
          _
        // Predicated region
        $region21: #{tpu_custom_call.1} parent=11 // pred_check
          %p325 = pneg %p110
        $region22: #{tpu_custom_call.1} parent=11 // pred_check_branch
          %327 = sbr.rel (%p325) target = $region24
        $region23: #{tpu_custom_call.1} parent=11 // pred_region
          _
        $region24: #{tpu_custom_call.1} parent=11 // pred_fallthru
          _
        // Predicated region
        $region25: #{tpu_custom_call.1} parent=11 // pred_check
          %p328 = pneg %p131
        $region26: #{tpu_custom_call.1} parent=11 // pred_check_branch
          %330 = sbr.rel (%p328) target = $region28
        $region27: #{tpu_custom_call.1} parent=11 // pred_region
          _
        $region28: #{tpu_custom_call.1} parent=11 // pred_fallthru
          _
        // Predicated region
        $region29: #{tpu_custom_call.1} parent=11 // pred_check
          %p331 = pneg %p152
        $region30: #{tpu_custom_call.1} parent=11 // pred_check_branch
          %333 = sbr.rel (%p331) target = $region32
        $region31: #{tpu_custom_call.1} parent=11 // pred_region
          _
        $region32: #{tpu_custom_call.1} parent=11 // pred_fallthru
          _
        // Predicated region
        $region33: #{tpu_custom_call.1} parent=11 // pred_check
          %p334 = pneg %p173
        $region34: #{tpu_custom_call.1} parent=11 // pred_check_branch
          %336 = sbr.rel (%p334) target = $region36
        $region35: #{tpu_custom_call.1} parent=11 // pred_region
          _
        $region36: #{tpu_custom_call.1} parent=11 // pred_fallthru
          _
        // Predicated region
        $region37: #{tpu_custom_call.1} parent=11 // pred_check
          %p337 = pneg %p194
        $region38: #{tpu_custom_call.1} parent=11 // pred_check_branch
          %339 = sbr.rel (%p337) target = $region40
        $region39: #{tpu_custom_call.1} parent=11 // pred_region
          _
        $region40: #{tpu_custom_call.1} parent=11 // pred_fallthru
          _
        // Predicated region
        $region41: #{tpu_custom_call.1} parent=11 // pred_check
          %p340 = pneg %p215
        $region42: #{tpu_custom_call.1} parent=11 // pred_check_branch
          %342 = sbr.rel (%p340) target = $region44
        $region43: #{tpu_custom_call.1} parent=11 // pred_region
          _
        $region44: #{tpu_custom_call.1} parent=11 // pred_fallthru
          _
        // Predicated region
        $region45: #{tpu_custom_call.1} parent=11 // pred_check
          %p343 = pneg %p236
        $region46: #{tpu_custom_call.1} parent=11 // pred_check_branch
          %345 = sbr.rel (%p343) target = $region48
        $region47: #{tpu_custom_call.1} parent=11 // pred_region
          _
        $region48: #{tpu_custom_call.1} parent=11 // pred_fallthru
          _
        // Predicated region
        $region49: #{tpu_custom_call.1} parent=11 // pred_check
          %p346 = pneg %p257
        $region50: #{tpu_custom_call.1} parent=11 // pred_check_branch
          %348 = sbr.rel (%p346) target = $region52
        $region51: #{tpu_custom_call.1} parent=11 // pred_region
          _
        $region52: #{tpu_custom_call.1} parent=11 // pred_fallthru
          _
        // Predicated region
        $region53: #{tpu_custom_call.1} parent=11 // pred_check
          %p349 = pneg %p278
        $region54: #{tpu_custom_call.1} parent=11 // pred_check_branch
          %351 = sbr.rel (%p349) target = $region56
        $region55: #{tpu_custom_call.1} parent=11 // pred_region
          _
        $region56: #{tpu_custom_call.1} parent=11 // pred_fallthru
          _
      $region12: #{tpu_custom_call.1} parent=5 // pred_fallthru
        _
      %p352 = scmp.lt.s32.totalorder %s21, 2
      // Predicated region
      $region57: #{tpu_custom_call.1} parent=5 // pred_check
        %p353 = pneg %p352
      $region58: #{tpu_custom_call.1} parent=5 // pred_check_branch
        %355 = sbr.rel (%p353) target = $region60
      $region59: #{tpu_custom_call.1} parent=5 // pred_region
        // Predicated region
        $region61: #{tpu_custom_call.1} parent=59 // pred_check
          %p356 = pneg %p41
        $region62: #{tpu_custom_call.1} parent=59 // pred_check_branch
          %358 = sbr.rel (%p356) target = $region64
        $region63: #{tpu_custom_call.1} parent=59 // pred_region
          %p359 = scmp.lt.s32.totalorder %s21, 1
          %s360 = scalar_select %p359, %s21, 1
          %s361 = smul.addr %s360, 8
          %s362 = scalar_lea.vmem %s0, %s361
        $region64: #{tpu_custom_call.1} parent=59 // pred_fallthru
          _
      $region60: #{tpu_custom_call.1} parent=5 // pred_fallthru
        _
      %p363 = scmp.le.s32.totalorder 1, %s21
      %p364 = scmp.lt.s32.totalorder %s21, 3
      %p365 = pnand %p363, %p364
      %p366 = pneg %p365
      // Predicated region
      $region65: #{tpu_custom_call.1} parent=5 // pred_check
        _
      $region66: #{tpu_custom_call.1} parent=5 // pred_check_branch
        %368 = sbr.rel (%p365) target = $region68
      $region67: #{tpu_custom_call.1} parent=5 // pred_region
        %s369 = ssub.s32 %s21, 1
        %p370 = scmp.lt.s32.totalorder %s26, 1
        %s371 = scalar_select %p370, %s26, 1
        %s372 = smul.addr %s371, 8
        %s373 = scalar_lea.vmem %s0, %s372
        %p374 = pneg %p47
        %p375 = pneg %p44
        %p376 = pneg %p68
        %p377 = pneg %p65
        %p378 = pneg %p89
        %p379 = pneg %p86
        %p380 = pneg %p110
        %p381 = pneg %p107
        %p382 = pneg %p131
        %p383 = pneg %p128
        %p384 = pneg %p152
        %p385 = pneg %p149
        %p386 = pneg %p173
        %p387 = pneg %p170
        %p388 = pneg %p194
        %p389 = pneg %p191
        %p390 = pneg %p215
        %p391 = pneg %p212
        %p392 = pneg %p236
        %p393 = pneg %p233
        %p394 = pneg %p257
        %p395 = pneg %p254
        %p396 = pneg %p278
        %p397 = pneg %p275
        %p398 = pneg %p304
        %p399 = pneg %p301
        %s400 = sand.u32 %s291, 1
        %s401 = scalar_lea.sflag [#allocation3], %s400
        %s402 = sand.u32 %s291, 1
        %s403 = smul.addr %s402, 8
        %s404 = scalar_lea.vmem [#allocation2], %s403
        %p405 = scmp.lt.s32.totalorder %s26, 1
        %s406 = scalar_select %p405, %s26, 1
        %s407 = smul.addr %s406, 8
        %s408 = scalar_lea.vmem %s0, %s407
        %v409 = vld [vmem:[%s408] sm:$0xff]
        %v410 = vld [vmem:[%s1] sm:$0x1]
        %v411 = vld [vmem:[%s2] sm:$0x1]
        %vm412 = vcmask 261120
        %v413 = vsel %vm412, %v409, 0.0
        %414 = vadd.xlane.f32.xlu0 %v413
        %v415 = vpop.xlane.xlu0 %414
        %v416 = vrcp.pop 32.0
        %v417 = vmul.f32 %v415, %v416
        %v418 = vsub.f32 %v409, %v417
        %v419 = vmul.f32 %v418, %v418
        %v420 = vsel %vm412, %v419, 0.0
        %421 = vadd.xlane.f32.xlu0 %v420
        %v422 = vpop.xlane.xlu0 %421
        %v423 = vmul.f32 %v422, %v416
        %v424 = vadd.f32 %v423, 1e-05
        %v425 = vrsqrt.pop %v424
        %v426 = vmul.f32 %v418, %v425
        %v428 = vlaneseq
        %v429 = vshrl.u32 %v428, 7
        %v430 = vsub.s32 0, %v429
        %v431 = vrot.slane %v410, %v430
        %v433 = vmul.f32 %v426, %v431
        %v435 = vlaneseq
        %v436 = vshrl.u32 %v435, 7
        %v437 = vsub.s32 0, %v436
        %v438 = vrot.slane %v411, %v437
        %v440 = vadd.f32 %v433, %v438
        %v441 = vld [vmem:[%s3] sm:$0xff]
        %v442 = vld [vmem:[%s3 + $0x8] sm:$0xff]
        %v443 = vld [vmem:[%s3 + $0x10] sm:$0xff]
        %v444 = vld [vmem:[%s3 + $0x18] sm:$0xff]
        %v446 = vsel %vm412, %v440, 0
        %448 = vmatprep.subr.mxu0 0.0
        %449 = vmatpush1.msra.mxu0 %v441
        %450 = vmatprep.subr.mxu0 0.0
        %451 = vmatpush1.msra.mxu0 %v442
        %452 = vmatprep.subr.mxu0 0.0
        %453 = vmatpush1.msra.mxu0 %v443
        %454 = vmatprep.subr.mxu0 0.0
        %455 = vmatpush1.msra.mxu0 %v444
        %456 = vmatprep.subr.mxu0 0.0
        %457 = vmatpush1.msra.mxu0 0.0
        %458 = vmatprep.subr.mxu0 0.0
        %459 = vmatpush1.msra.mxu0 0.0
        %460 = vmatprep.subr.mxu0 0.0
        %461 = vmatpush1.msra.mxu0 0.0
        %462 = vmatprep.subr.mxu0 0.0
        %463 = vmatpush1.msra.mxu0 0.0
        %464 = vmatprep.subr.mxu0 0.0
        %465 = vmatpush1.msra.mxu0 0.0
        %466 = vmatprep.subr.mxu0 0.0
        %467 = vmatpush1.msra.mxu0 0.0
        %468 = vmatprep.subr.mxu0 0.0
        %469 = vmatpush1.msra.mxu0 0.0
        %470 = vmatprep.subr.mxu0 0.0
        %471 = vmatpush1.msra.mxu0 0.0
        %472 = vmatprep.subr.mxu0 0.0
        %473 = vmatpush1.msra.mxu0 0.0
        %474 = vmatprep.subr.mxu0 0.0
        %475 = vmatpush1.msra.mxu0 0.0
        %476 = vmatprep.subr.mxu0 0.0
        %477 = vmatpush1.msra.mxu0 0.0
        %478 = vmatprep.subr.mxu0 0.0
        %479 = vmatpush1.msra.mxu0 0.0
        %480 = vmatprep.subr.mxu0 0.0
        %481 = vmatpush1.msra.mxu0 0.0
        %482 = vmatprep.subr.mxu0 0.0
        %483 = vmatpush1.msra.mxu0 0.0
        %484 = vmatprep.subr.mxu0 0.0
        %485 = vmatpush1.msra.mxu0 0.0
        %486 = vmatprep.subr.mxu0 0.0
        %487 = vmatpush1.msra.mxu0 0.0
        %488 = vmatprep.subr.mxu0 0.0
        %489 = vmatpush1.msra.mxu0 0.0
        %490 = vmatprep.subr.mxu0 0.0
        %491 = vmatpush1.msra.mxu0 0.0
        %492 = vmatprep.subr.mxu0 0.0
        %493 = vmatpush1.msra.mxu0 0.0
        %494 = vmatprep.subr.mxu0 0.0
        %495 = vmatpush1.msra.mxu0 0.0
        %496 = vmatprep.subr.mxu0 0.0
        %497 = vmatpush1.msra.mxu0 0.0
        %498 = vmatprep.subr.mxu0 0.0
        %499 = vmatpush1.msra.mxu0 0.0
        %500 = vmatprep.subr.mxu0 0.0
        %501 = vmatpush1.msra.mxu0 0.0
        %502 = vmatprep.subr.mxu0 0.0
        %503 = vmatpush1.msra.mxu0 0.0
        %504 = vmatprep.subr.mxu0 0.0
        %505 = vmatpush1.msra.mxu0 0.0
        %506 = vmatprep.subr.mxu0 0.0
        %507 = vmatpush1.msra.mxu0 0.0
        %508 = vmatprep.subr.mxu0 0.0
        %509 = vmatpush1.msra.mxu0 0.0
        %510 = vmatprep.subr.mxu0 0.0
        %511 = vmatpush1.msra.mxu0 0.0
        %512 = vmatprep.mubr.f32.mxu0 0.0
        %513 = vmatmul.mubr.f32.gmra.mrb[0].mxu0 %v446
        %v514 = vpop.f32.mrb[0].mxu0
        %v515 = vadd.f32 0.0, %v514
        %v516 = vpop.f32.mrb[0].mxu0
        %517 = vdwg.mxu0
        %v518 = vlaneseq
        %v519 = vshrl.u32 %v518, 7
        %v520 = vlaneseq
        %v521 = vand.u32 %v520, 127
        %vm522 = vcmp.le.s32.totalorder %v521, %v519
        %524 = vrot.lane.b32.xlu0 %v515, 96
        %v525 = vpop.permute.xlu0 %524
        %vm526 = vcmask 64512
        %v527 = vsel %vm526, %v515, 0
        %v529 = vsel %vm526, %v525, 0
        %531 = vmatprep.subr.mxu0 0.0
        %532 = vmatpush1.xpose.msra.mxu0 %v529
        %533 = vmatprep.subr.mxu0 0.0
        %534 = vmatpush1.xpose.msra.mxu0 0.0
        %535 = vmatprep.subr.mxu0 0.0
        %536 = vmatpush1.xpose.msra.mxu0 0.0
        %537 = vmatprep.subr.mxu0 0.0
        %538 = vmatpush1.xpose.msra.mxu0 0.0
        %539 = vmatprep.subr.mxu0 0.0
        %540 = vmatpush1.xpose.msra.mxu0 0.0
        %541 = vmatprep.subr.mxu0 0.0
        %542 = vmatpush1.xpose.msra.mxu0 0.0
        %543 = vmatprep.subr.mxu0 0.0
        %544 = vmatpush1.xpose.msra.mxu0 0.0
        %545 = vmatprep.subr.mxu0 0.0
        %546 = vmatpush1.xpose.msra.mxu0 0.0
        %547 = vmatprep.subr.mxu0 0.0
        %548 = vmatpush1.xpose.msra.mxu0 0.0
        %549 = vmatprep.subr.mxu0 0.0
        %550 = vmatpush1.xpose.msra.mxu0 0.0
        %551 = vmatprep.subr.mxu0 0.0
        %552 = vmatpush1.xpose.msra.mxu0 0.0
        %553 = vmatprep.subr.mxu0 0.0
        %554 = vmatpush1.xpose.msra.mxu0 0.0
        %555 = vmatprep.subr.mxu0 0.0
        %556 = vmatpush1.xpose.msra.mxu0 0.0
        %557 = vmatprep.subr.mxu0 0.0
        %558 = vmatpush1.xpose.msra.mxu0 0.0
        %559 = vmatprep.subr.mxu0 0.0
        %560 = vmatpush1.xpose.msra.mxu0 0.0
        %561 = vmatprep.subr.mxu0 0.0
        %562 = vmatpush1.xpose.msra.mxu0 0.0
        %563 = vmatprep.subr.mxu0 0.0
        %564 = vmatpush1.xpose.msra.mxu0 0.0
        %565 = vmatprep.subr.mxu0 0.0
        %566 = vmatpush1.xpose.msra.mxu0 0.0
        %567 = vmatprep.subr.mxu0 0.0
        %568 = vmatpush1.xpose.msra.mxu0 0.0
        %569 = vmatprep.subr.mxu0 0.0
        %570 = vmatpush1.xpose.msra.mxu0 0.0
        %571 = vmatprep.subr.mxu0 0.0
        %572 = vmatpush1.xpose.msra.mxu0 0.0
        %573 = vmatprep.subr.mxu0 0.0
        %574 = vmatpush1.xpose.msra.mxu0 0.0
        %575 = vmatprep.subr.mxu0 0.0
        %576 = vmatpush1.xpose.msra.mxu0 0.0
        %577 = vmatprep.subr.mxu0 0.0
        %578 = vmatpush1.xpose.msra.mxu0 0.0
        %579 = vmatprep.subr.mxu0 0.0
        %580 = vmatpush1.xpose.msra.mxu0 0.0
        %581 = vmatprep.subr.mxu0 0.0
        %582 = vmatpush1.xpose.msra.mxu0 0.0
        %583 = vmatprep.subr.mxu0 0.0
        %584 = vmatpush1.xpose.msra.mxu0 0.0
        %585 = vmatprep.subr.mxu0 0.0
        %586 = vmatpush1.xpose.msra.mxu0 0.0
        %587 = vmatprep.subr.mxu0 0.0
        %588 = vmatpush1.xpose.msra.mxu0 0.0
        %589 = vmatprep.subr.mxu0 0.0
        %590 = vmatpush1.xpose.msra.mxu0 0.0
        %591 = vmatprep.subr.mxu0 0.0
        %592 = vmatpush1.xpose.msra.mxu0 0.0
        %593 = vmatprep.subr.mxu0 0.0
        %594 = vmatpush1.xpose.msra.mxu0 0.0
        %595 = vmatprep.mubr.f32.mxu0 0.0
        %596 = vmatmul.mubr.f32.gmra.mrb[0].mxu0 %v527
        %v597 = vpop.f32.mrb[0].mxu0
        %v598 = vadd.f32 0.0, %v597
        %v599 = vpop.f32.mrb[0].mxu0
        %600 = vdwg.mxu0
        %v601 = vsel %vm522, %v598, -1e+30
        %v602 = vsel %vm526, %v601, -inf
        %603 = vmax.xlane.f32.xlu0 %v602
        %v604 = vpop.xlane.xlu0 %603
        %v605 = vsub.f32 %v601, %v604
        %v606 = vmul.f32 %v605, 1.442695
        %v607 = vpow.pop %v606
        %v608 = vsel %vm526, %v607, 0.0
        %609 = vadd.xlane.f32.xlu0 %v608
        %v610 = vpop.xlane.xlu0 %609
        %v611 = vrcp.pop %v610
        %v612 = vmul.f32 %v607, %v611
        %613 = vrot.lane.b32.xlu0 %v515, 64
        %v614 = vpop.permute.xlu0 %613
        %v617 = vsel %vm526, %v612, 0
        %619 = vmatprep.subr.mxu0 0.0
        %620 = vmatpush1.msra.mxu0 %v614
        %621 = vmatprep.subr.mxu0 0.0
        %622 = vmatpush1.msra.mxu0 0.0
        %623 = vmatprep.subr.mxu0 0.0
        %624 = vmatpush1.msra.mxu0 0.0
        %625 = vmatprep.subr.mxu0 0.0
        %626 = vmatpush1.msra.mxu0 0.0
        %627 = vmatprep.subr.mxu0 0.0
        %628 = vmatpush1.msra.mxu0 0.0
        %629 = vmatprep.subr.mxu0 0.0
        %630 = vmatpush1.msra.mxu0 0.0
        %631 = vmatprep.subr.mxu0 0.0
        %632 = vmatpush1.msra.mxu0 0.0
        %633 = vmatprep.subr.mxu0 0.0
        %634 = vmatpush1.msra.mxu0 0.0
        %635 = vmatprep.subr.mxu0 0.0
        %636 = vmatpush1.msra.mxu0 0.0
        %637 = vmatprep.subr.mxu0 0.0
        %638 = vmatpush1.msra.mxu0 0.0
        %639 = vmatprep.subr.mxu0 0.0
        %640 = vmatpush1.msra.mxu0 0.0
        %641 = vmatprep.subr.mxu0 0.0
        %642 = vmatpush1.msra.mxu0 0.0
        %643 = vmatprep.subr.mxu0 0.0
        %644 = vmatpush1.msra.mxu0 0.0
        %645 = vmatprep.subr.mxu0 0.0
        %646 = vmatpush1.msra.mxu0 0.0
        %647 = vmatprep.subr.mxu0 0.0
        %648 = vmatpush1.msra.mxu0 0.0
        %649 = vmatprep.subr.mxu0 0.0
        %650 = vmatpush1.msra.mxu0 0.0
        %651 = vmatprep.subr.mxu0 0.0
        %652 = vmatpush1.msra.mxu0 0.0
        %653 = vmatprep.subr.mxu0 0.0
        %654 = vmatpush1.msra.mxu0 0.0
        %655 = vmatprep.subr.mxu0 0.0
        %656 = vmatpush1.msra.mxu0 0.0
        %657 = vmatprep.subr.mxu0 0.0
        %658 = vmatpush1.msra.mxu0 0.0
        %659 = vmatprep.subr.mxu0 0.0
        %660 = vmatpush1.msra.mxu0 0.0
        %661 = vmatprep.subr.mxu0 0.0
        %662 = vmatpush1.msra.mxu0 0.0
        %663 = vmatprep.subr.mxu0 0.0
        %664 = vmatpush1.msra.mxu0 0.0
        %665 = vmatprep.subr.mxu0 0.0
        %666 = vmatpush1.msra.mxu0 0.0
        %667 = vmatprep.subr.mxu0 0.0
        %668 = vmatpush1.msra.mxu0 0.0
        %669 = vmatprep.subr.mxu0 0.0
        %670 = vmatpush1.msra.mxu0 0.0
        %671 = vmatprep.subr.mxu0 0.0
        %672 = vmatpush1.msra.mxu0 0.0
        %673 = vmatprep.subr.mxu0 0.0
        %674 = vmatpush1.msra.mxu0 0.0
        %675 = vmatprep.subr.mxu0 0.0
        %676 = vmatpush1.msra.mxu0 0.0
        %677 = vmatprep.subr.mxu0 0.0
        %678 = vmatpush1.msra.mxu0 0.0
        %679 = vmatprep.subr.mxu0 0.0
        %680 = vmatpush1.msra.mxu0 0.0
        %681 = vmatprep.subr.mxu0 0.0
        %682 = vmatpush1.msra.mxu0 0.0
        %683 = vmatprep.mubr.f32.mxu0 0.0
        %684 = vmatmul.mubr.f32.gmra.mrb[0].mxu0 %v617
        %v685 = vpop.f32.mrb[0].mxu0
        %v686 = vadd.f32 0.0, %v685
        %v687 = vpop.f32.mrb[0].mxu0
        %688 = vdwg.mxu0
        %689 = vrot.lane.b32.xlu0 %v515, 120
        %v690 = vpop.permute.xlu0 %689
        %691 = vrot.lane.b32.xlu0 %v515, 88
        %v692 = vpop.permute.xlu0 %691
        %v693 = vsel %vm526, %v690, 0
        %v695 = vsel %vm526, %v692, 0
        %697 = vmatprep.subr.mxu0 0.0
        %698 = vmatpush1.xpose.msra.mxu0 %v695
        %699 = vmatprep.subr.mxu0 0.0
        %700 = vmatpush1.xpose.msra.mxu0 0.0
        %701 = vmatprep.subr.mxu0 0.0
        %702 = vmatpush1.xpose.msra.mxu0 0.0
        %703 = vmatprep.subr.mxu0 0.0
        %704 = vmatpush1.xpose.msra.mxu0 0.0
        %705 = vmatprep.subr.mxu0 0.0
        %706 = vmatpush1.xpose.msra.mxu0 0.0
        %707 = vmatprep.subr.mxu0 0.0
        %708 = vmatpush1.xpose.msra.mxu0 0.0
        %709 = vmatprep.subr.mxu0 0.0
        %710 = vmatpush1.xpose.msra.mxu0 0.0
        %711 = vmatprep.subr.mxu0 0.0
        %712 = vmatpush1.xpose.msra.mxu0 0.0
        %713 = vmatprep.subr.mxu0 0.0
        %714 = vmatpush1.xpose.msra.mxu0 0.0
        %715 = vmatprep.subr.mxu0 0.0
        %716 = vmatpush1.xpose.msra.mxu0 0.0
        %717 = vmatprep.subr.mxu0 0.0
        %718 = vmatpush1.xpose.msra.mxu0 0.0
        %719 = vmatprep.subr.mxu0 0.0
        %720 = vmatpush1.xpose.msra.mxu0 0.0
        %721 = vmatprep.subr.mxu0 0.0
        %722 = vmatpush1.xpose.msra.mxu0 0.0
        %723 = vmatprep.subr.mxu0 0.0
        %724 = vmatpush1.xpose.msra.mxu0 0.0
        %725 = vmatprep.subr.mxu0 0.0
        %726 = vmatpush1.xpose.msra.mxu0 0.0
        %727 = vmatprep.subr.mxu0 0.0
        %728 = vmatpush1.xpose.msra.mxu0 0.0
        %729 = vmatprep.subr.mxu0 0.0
        %730 = vmatpush1.xpose.msra.mxu0 0.0
        %731 = vmatprep.subr.mxu0 0.0
        %732 = vmatpush1.xpose.msra.mxu0 0.0
        %733 = vmatprep.subr.mxu0 0.0
        %734 = vmatpush1.xpose.msra.mxu0 0.0
        %735 = vmatprep.subr.mxu0 0.0
        %736 = vmatpush1.xpose.msra.mxu0 0.0
        %737 = vmatprep.subr.mxu0 0.0
        %738 = vmatpush1.xpose.msra.mxu0 0.0
        %739 = vmatprep.subr.mxu0 0.0
        %740 = vmatpush1.xpose.msra.mxu0 0.0
        %741 = vmatprep.subr.mxu0 0.0
        %742 = vmatpush1.xpose.msra.mxu0 0.0
        %743 = vmatprep.subr.mxu0 0.0
        %744 = vmatpush1.xpose.msra.mxu0 0.0
        %745 = vmatprep.subr.mxu0 0.0
        %746 = vmatpush1.xpose.msra.mxu0 0.0
        %747 = vmatprep.subr.mxu0 0.0
        %748 = vmatpush1.xpose.msra.mxu0 0.0
        %749 = vmatprep.subr.mxu0 0.0
        %750 = vmatpush1.xpose.msra.mxu0 0.0
        %751 = vmatprep.subr.mxu0 0.0
        %752 = vmatpush1.xpose.msra.mxu0 0.0
        %753 = vmatprep.subr.mxu0 0.0
        %754 = vmatpush1.xpose.msra.mxu0 0.0
        %755 = vmatprep.subr.mxu0 0.0
        %756 = vmatpush1.xpose.msra.mxu0 0.0
        %757 = vmatprep.subr.mxu0 0.0
        %758 = vmatpush1.xpose.msra.mxu0 0.0
        %759 = vmatprep.subr.mxu0 0.0
        %760 = vmatpush1.xpose.msra.mxu0 0.0
        %761 = vmatprep.mubr.f32.mxu0 0.0
        %762 = vmatmul.mubr.f32.gmra.mrb[0].mxu0 %v693
        %v763 = vpop.f32.mrb[0].mxu0
        %v764 = vadd.f32 0.0, %v763
        %v765 = vpop.f32.mrb[0].mxu0
        %766 = vdwg.mxu0
        %v767 = vsel %vm522, %v764, -1e+30
        %v768 = vsel %vm526, %v767, -inf
        %769 = vmax.xlane.f32.xlu0 %v768
        %v770 = vpop.xlane.xlu0 %769
        %v771 = vsub.f32 %v767, %v770
        %v772 = vmul.f32 %v771, 1.442695
        %v773 = vpow.pop %v772
        %v774 = vsel %vm526, %v773, 0.0
        %775 = vadd.xlane.f32.xlu0 %v774
        %v776 = vpop.xlane.xlu0 %775
        %v777 = vrcp.pop %v776
        %v778 = vmul.f32 %v773, %v777
        %779 = vrot.lane.b32.xlu0 %v515, 56
        %v780 = vpop.permute.xlu0 %779
        %v783 = vsel %vm526, %v778, 0
        %785 = vmatprep.subr.mxu0 0.0
        %786 = vmatpush1.msra.mxu0 %v780
        %787 = vmatprep.subr.mxu0 0.0
        %788 = vmatpush1.msra.mxu0 0.0
        %789 = vmatprep.subr.mxu0 0.0
        %790 = vmatpush1.msra.mxu0 0.0
        %791 = vmatprep.subr.mxu0 0.0
        %792 = vmatpush1.msra.mxu0 0.0
        %793 = vmatprep.subr.mxu0 0.0
        %794 = vmatpush1.msra.mxu0 0.0
        %795 = vmatprep.subr.mxu0 0.0
        %796 = vmatpush1.msra.mxu0 0.0
        %797 = vmatprep.subr.mxu0 0.0
        %798 = vmatpush1.msra.mxu0 0.0
        %799 = vmatprep.subr.mxu0 0.0
        %800 = vmatpush1.msra.mxu0 0.0
        %801 = vmatprep.subr.mxu0 0.0
        %802 = vmatpush1.msra.mxu0 0.0
        %803 = vmatprep.subr.mxu0 0.0
        %804 = vmatpush1.msra.mxu0 0.0
        %805 = vmatprep.subr.mxu0 0.0
        %806 = vmatpush1.msra.mxu0 0.0
        %807 = vmatprep.subr.mxu0 0.0
        %808 = vmatpush1.msra.mxu0 0.0
        %809 = vmatprep.subr.mxu0 0.0
        %810 = vmatpush1.msra.mxu0 0.0
        %811 = vmatprep.subr.mxu0 0.0
        %812 = vmatpush1.msra.mxu0 0.0
        %813 = vmatprep.subr.mxu0 0.0
        %814 = vmatpush1.msra.mxu0 0.0
        %815 = vmatprep.subr.mxu0 0.0
        %816 = vmatpush1.msra.mxu0 0.0
        %817 = vmatprep.subr.mxu0 0.0
        %818 = vmatpush1.msra.mxu0 0.0
        %819 = vmatprep.subr.mxu0 0.0
        %820 = vmatpush1.msra.mxu0 0.0
        %821 = vmatprep.subr.mxu0 0.0
        %822 = vmatpush1.msra.mxu0 0.0
        %823 = vmatprep.subr.mxu0 0.0
        %824 = vmatpush1.msra.mxu0 0.0
        %825 = vmatprep.subr.mxu0 0.0
        %826 = vmatpush1.msra.mxu0 0.0
        %827 = vmatprep.subr.mxu0 0.0
        %828 = vmatpush1.msra.mxu0 0.0
        %829 = vmatprep.subr.mxu0 0.0
        %830 = vmatpush1.msra.mxu0 0.0
        %831 = vmatprep.subr.mxu0 0.0
        %832 = vmatpush1.msra.mxu0 0.0
        %833 = vmatprep.subr.mxu0 0.0
        %834 = vmatpush1.msra.mxu0 0.0
        %835 = vmatprep.subr.mxu0 0.0
        %836 = vmatpush1.msra.mxu0 0.0
        %837 = vmatprep.subr.mxu0 0.0
        %838 = vmatpush1.msra.mxu0 0.0
        %839 = vmatprep.subr.mxu0 0.0
        %840 = vmatpush1.msra.mxu0 0.0
        %841 = vmatprep.subr.mxu0 0.0
        %842 = vmatpush1.msra.mxu0 0.0
        %843 = vmatprep.subr.mxu0 0.0
        %844 = vmatpush1.msra.mxu0 0.0
        %845 = vmatprep.subr.mxu0 0.0
        %846 = vmatpush1.msra.mxu0 0.0
        %847 = vmatprep.subr.mxu0 0.0
        %848 = vmatpush1.msra.mxu0 0.0
        %849 = vmatprep.mubr.f32.mxu0 0.0
        %850 = vmatmul.mubr.f32.gmra.mrb[0].mxu0 %v783
        %v851 = vpop.f32.mrb[0].mxu0
        %v852 = vadd.f32 0.0, %v851
        %v853 = vpop.f32.mrb[0].mxu0
        %854 = vdwg.mxu0
        %855 = vrot.lane.b32.xlu0 %v515, 112
        %v856 = vpop.permute.xlu0 %855
        %857 = vrot.lane.b32.xlu0 %v515, 80
        %v858 = vpop.permute.xlu0 %857
        %v859 = vsel %vm526, %v856, 0
        %v861 = vsel %vm526, %v858, 0
        %863 = vmatprep.subr.mxu0 0.0
        %864 = vmatpush1.xpose.msra.mxu0 %v861
        %865 = vmatprep.subr.mxu0 0.0
        %866 = vmatpush1.xpose.msra.mxu0 0.0
        %867 = vmatprep.subr.mxu0 0.0
        %868 = vmatpush1.xpose.msra.mxu0 0.0
        %869 = vmatprep.subr.mxu0 0.0
        %870 = vmatpush1.xpose.msra.mxu0 0.0
        %871 = vmatprep.subr.mxu0 0.0
        %872 = vmatpush1.xpose.msra.mxu0 0.0
        %873 = vmatprep.subr.mxu0 0.0
        %874 = vmatpush1.xpose.msra.mxu0 0.0
        %875 = vmatprep.subr.mxu0 0.0
        %876 = vmatpush1.xpose.msra.mxu0 0.0
        %877 = vmatprep.subr.mxu0 0.0
        %878 = vmatpush1.xpose.msra.mxu0 0.0
        %879 = vmatprep.subr.mxu0 0.0
        %880 = vmatpush1.xpose.msra.mxu0 0.0
        %881 = vmatprep.subr.mxu0 0.0
        %882 = vmatpush1.xpose.msra.mxu0 0.0
        %883 = vmatprep.subr.mxu0 0.0
        %884 = vmatpush1.xpose.msra.mxu0 0.0
        %885 = vmatprep.subr.mxu0 0.0
        %886 = vmatpush1.xpose.msra.mxu0 0.0
        %887 = vmatprep.subr.mxu0 0.0
        %888 = vmatpush1.xpose.msra.mxu0 0.0
        %889 = vmatprep.subr.mxu0 0.0
        %890 = vmatpush1.xpose.msra.mxu0 0.0
        %891 = vmatprep.subr.mxu0 0.0
        %892 = vmatpush1.xpose.msra.mxu0 0.0
        %893 = vmatprep.subr.mxu0 0.0
        %894 = vmatpush1.xpose.msra.mxu0 0.0
        %895 = vmatprep.subr.mxu0 0.0
        %896 = vmatpush1.xpose.msra.mxu0 0.0
        %897 = vmatprep.subr.mxu0 0.0
        %898 = vmatpush1.xpose.msra.mxu0 0.0
        %899 = vmatprep.subr.mxu0 0.0
        %900 = vmatpush1.xpose.msra.mxu0 0.0
        %901 = vmatprep.subr.mxu0 0.0
        %902 = vmatpush1.xpose.msra.mxu0 0.0
        %903 = vmatprep.subr.mxu0 0.0
        %904 = vmatpush1.xpose.msra.mxu0 0.0
        %905 = vmatprep.subr.mxu0 0.0
        %906 = vmatpush1.xpose.msra.mxu0 0.0
        %907 = vmatprep.subr.mxu0 0.0
        %908 = vmatpush1.xpose.msra.mxu0 0.0
        %909 = vmatprep.subr.mxu0 0.0
        %910 = vmatpush1.xpose.msra.mxu0 0.0
        %911 = vmatprep.subr.mxu0 0.0
        %912 = vmatpush1.xpose.msra.mxu0 0.0
        %913 = vmatprep.subr.mxu0 0.0
        %914 = vmatpush1.xpose.msra.mxu0 0.0
        %915 = vmatprep.subr.mxu0 0.0
        %916 = vmatpush1.xpose.msra.mxu0 0.0
        %917 = vmatprep.subr.mxu0 0.0
        %918 = vmatpush1.xpose.msra.mxu0 0.0
        %919 = vmatprep.subr.mxu0 0.0
        %920 = vmatpush1.xpose.msra.mxu0 0.0
        %921 = vmatprep.subr.mxu0 0.0
        %922 = vmatpush1.xpose.msra.mxu0 0.0
        %923 = vmatprep.subr.mxu0 0.0
        %924 = vmatpush1.xpose.msra.mxu0 0.0
        %925 = vmatprep.subr.mxu0 0.0
        %926 = vmatpush1.xpose.msra.mxu0 0.0
        %927 = vmatprep.mubr.f32.mxu0 0.0
        %928 = vmatmul.mubr.f32.gmra.mrb[0].mxu0 %v859
        %v929 = vpop.f32.mrb[0].mxu0
        %v930 = vadd.f32 0.0, %v929
        %v931 = vpop.f32.mrb[0].mxu0
        %932 = vdwg.mxu0
        %v933 = vsel %vm522, %v930, -1e+30
        %v934 = vsel %vm526, %v933, -inf
        %935 = vmax.xlane.f32.xlu0 %v934
        %v936 = vpop.xlane.xlu0 %935
        %v937 = vsub.f32 %v933, %v936
        %v938 = vmul.f32 %v937, 1.442695
        %v939 = vpow.pop %v938
        %v940 = vsel %vm526, %v939, 0.0
        %941 = vadd.xlane.f32.xlu0 %v940
        %v942 = vpop.xlane.xlu0 %941
        %v943 = vrcp.pop %v942
        %v944 = vmul.f32 %v939, %v943
        %945 = vrot.lane.b32.xlu0 %v515, 48
        %v946 = vpop.permute.xlu0 %945
        %v949 = vsel %vm526, %v944, 0
        %951 = vmatprep.subr.mxu0 0.0
        %952 = vmatpush1.msra.mxu0 %v946
        %953 = vmatprep.subr.mxu0 0.0
        %954 = vmatpush1.msra.mxu0 0.0
        %955 = vmatprep.subr.mxu0 0.0
        %956 = vmatpush1.msra.mxu0 0.0
        %957 = vmatprep.subr.mxu0 0.0
        %958 = vmatpush1.msra.mxu0 0.0
        %959 = vmatprep.subr.mxu0 0.0
        %960 = vmatpush1.msra.mxu0 0.0
        %961 = vmatprep.subr.mxu0 0.0
        %962 = vmatpush1.msra.mxu0 0.0
        %963 = vmatprep.subr.mxu0 0.0
        %964 = vmatpush1.msra.mxu0 0.0
        %965 = vmatprep.subr.mxu0 0.0
        %966 = vmatpush1.msra.mxu0 0.0
        %967 = vmatprep.subr.mxu0 0.0
        %968 = vmatpush1.msra.mxu0 0.0
        %969 = vmatprep.subr.mxu0 0.0
        %970 = vmatpush1.msra.mxu0 0.0
        %971 = vmatprep.subr.mxu0 0.0
        %972 = vmatpush1.msra.mxu0 0.0
        %973 = vmatprep.subr.mxu0 0.0
        %974 = vmatpush1.msra.mxu0 0.0
        %975 = vmatprep.subr.mxu0 0.0
        %976 = vmatpush1.msra.mxu0 0.0
        %977 = vmatprep.subr.mxu0 0.0
        %978 = vmatpush1.msra.mxu0 0.0
        %979 = vmatprep.subr.mxu0 0.0
        %980 = vmatpush1.msra.mxu0 0.0
        %981 = vmatprep.subr.mxu0 0.0
        %982 = vmatpush1.msra.mxu0 0.0
        %983 = vmatprep.subr.mxu0 0.0
        %984 = vmatpush1.msra.mxu0 0.0
        %985 = vmatprep.subr.mxu0 0.0
        %986 = vmatpush1.msra.mxu0 0.0
        %987 = vmatprep.subr.mxu0 0.0
        %988 = vmatpush1.msra.mxu0 0.0
        %989 = vmatprep.subr.mxu0 0.0
        %990 = vmatpush1.msra.mxu0 0.0
        %991 = vmatprep.subr.mxu0 0.0
        %992 = vmatpush1.msra.mxu0 0.0
        %993 = vmatprep.subr.mxu0 0.0
        %994 = vmatpush1.msra.mxu0 0.0
        %995 = vmatprep.subr.mxu0 0.0
        %996 = vmatpush1.msra.mxu0 0.0
        %997 = vmatprep.subr.mxu0 0.0
        %998 = vmatpush1.msra.mxu0 0.0
        %999 = vmatprep.subr.mxu0 0.0
        %1000 = vmatpush1.msra.mxu0 0.0
        %1001 = vmatprep.subr.mxu0 0.0
        %1002 = vmatpush1.msra.mxu0 0.0
        %1003 = vmatprep.subr.mxu0 0.0
        %1004 = vmatpush1.msra.mxu0 0.0
        %1005 = vmatprep.subr.mxu0 0.0
        %1006 = vmatpush1.msra.mxu0 0.0
        %1007 = vmatprep.subr.mxu0 0.0
        %1008 = vmatpush1.msra.mxu0 0.0
        %1009 = vmatprep.subr.mxu0 0.0
        %1010 = vmatpush1.msra.mxu0 0.0
        %1011 = vmatprep.subr.mxu0 0.0
        %1012 = vmatpush1.msra.mxu0 0.0
        %1013 = vmatprep.subr.mxu0 0.0
        %1014 = vmatpush1.msra.mxu0 0.0
        %1015 = vmatprep.mubr.f32.mxu0 0.0
        %1016 = vmatmul.mubr.f32.gmra.mrb[0].mxu0 %v949
        %v1017 = vpop.f32.mrb[0].mxu0
        %v1018 = vadd.f32 0.0, %v1017
        %v1019 = vpop.f32.mrb[0].mxu0
        %1020 = vdwg.mxu0
        %1021 = vrot.lane.b32.xlu0 %v515, 104
        %v1022 = vpop.permute.xlu0 %1021
        %1023 = vrot.lane.b32.xlu0 %v515, 72
        %v1024 = vpop.permute.xlu0 %1023
        %v1025 = vsel %vm526, %v1022, 0
        %v1027 = vsel %vm526, %v1024, 0
        %1029 = vmatprep.subr.mxu0 0.0
        %1030 = vmatpush1.xpose.msra.mxu0 %v1027
        %1031 = vmatprep.subr.mxu0 0.0
        %1032 = vmatpush1.xpose.msra.mxu0 0.0
        %1033 = vmatprep.subr.mxu0 0.0
        %1034 = vmatpush1.xpose.msra.mxu0 0.0
        %1035 = vmatprep.subr.mxu0 0.0
        %1036 = vmatpush1.xpose.msra.mxu0 0.0
        %1037 = vmatprep.subr.mxu0 0.0
        %1038 = vmatpush1.xpose.msra.mxu0 0.0
        %1039 = vmatprep.subr.mxu0 0.0
        %1040 = vmatpush1.xpose.msra.mxu0 0.0
        %1041 = vmatprep.subr.mxu0 0.0
        %1042 = vmatpush1.xpose.msra.mxu0 0.0
        %1043 = vmatprep.subr.mxu0 0.0
        %1044 = vmatpush1.xpose.msra.mxu0 0.0
        %1045 = vmatprep.subr.mxu0 0.0
        %1046 = vmatpush1.xpose.msra.mxu0 0.0
        %1047 = vmatprep.subr.mxu0 0.0
        %1048 = vmatpush1.xpose.msra.mxu0 0.0
        %1049 = vmatprep.subr.mxu0 0.0
        %1050 = vmatpush1.xpose.msra.mxu0 0.0
        %1051 = vmatprep.subr.mxu0 0.0
        %1052 = vmatpush1.xpose.msra.mxu0 0.0
        %1053 = vmatprep.subr.mxu0 0.0
        %1054 = vmatpush1.xpose.msra.mxu0 0.0
        %1055 = vmatprep.subr.mxu0 0.0
        %1056 = vmatpush1.xpose.msra.mxu0 0.0
        %1057 = vmatprep.subr.mxu0 0.0
        %1058 = vmatpush1.xpose.msra.mxu0 0.0
        %1059 = vmatprep.subr.mxu0 0.0
        %1060 = vmatpush1.xpose.msra.mxu0 0.0
        %1061 = vmatprep.subr.mxu0 0.0
        %1062 = vmatpush1.xpose.msra.mxu0 0.0
        %1063 = vmatprep.subr.mxu0 0.0
        %1064 = vmatpush1.xpose.msra.mxu0 0.0
        %1065 = vmatprep.subr.mxu0 0.0
        %1066 = vmatpush1.xpose.msra.mxu0 0.0
        %1067 = vmatprep.subr.mxu0 0.0
        %1068 = vmatpush1.xpose.msra.mxu0 0.0
        %1069 = vmatprep.subr.mxu0 0.0
        %1070 = vmatpush1.xpose.msra.mxu0 0.0
        %1071 = vmatprep.subr.mxu0 0.0
        %1072 = vmatpush1.xpose.msra.mxu0 0.0
        %1073 = vmatprep.subr.mxu0 0.0
        %1074 = vmatpush1.xpose.msra.mxu0 0.0
        %1075 = vmatprep.subr.mxu0 0.0
        %1076 = vmatpush1.xpose.msra.mxu0 0.0
        %1077 = vmatprep.subr.mxu0 0.0
        %1078 = vmatpush1.xpose.msra.mxu0 0.0
        %1079 = vmatprep.subr.mxu0 0.0
        %1080 = vmatpush1.xpose.msra.mxu0 0.0
        %1081 = vmatprep.subr.mxu0 0.0
        %1082 = vmatpush1.xpose.msra.mxu0 0.0
        %1083 = vmatprep.subr.mxu0 0.0
        %1084 = vmatpush1.xpose.msra.mxu0 0.0
        %1085 = vmatprep.subr.mxu0 0.0
        %1086 = vmatpush1.xpose.msra.mxu0 0.0
        %1087 = vmatprep.subr.mxu0 0.0
        %1088 = vmatpush1.xpose.msra.mxu0 0.0
        %1089 = vmatprep.subr.mxu0 0.0
        %1090 = vmatpush1.xpose.msra.mxu0 0.0
        %1091 = vmatprep.subr.mxu0 0.0
        %1092 = vmatpush1.xpose.msra.mxu0 0.0
        %1093 = vmatprep.mubr.f32.mxu0 0.0
        %1094 = vmatmul.mubr.f32.gmra.mrb[0].mxu0 %v1025
        %v1095 = vpop.f32.mrb[0].mxu0
        %v1096 = vadd.f32 0.0, %v1095
        %v1097 = vpop.f32.mrb[0].mxu0
        %1098 = vdwg.mxu0
        %v1099 = vsel %vm522, %v1096, -1e+30
        %v1100 = vsel %vm526, %v1099, -inf
        %1101 = vmax.xlane.f32.xlu0 %v1100
        %v1102 = vpop.xlane.xlu0 %1101
        %v1103 = vsub.f32 %v1099, %v1102
        %v1104 = vmul.f32 %v1103, 1.442695
        %v1105 = vpow.pop %v1104
        %v1106 = vsel %vm526, %v1105, 0.0
        %1107 = vadd.xlane.f32.xlu0 %v1106
        %v1108 = vpop.xlane.xlu0 %1107
        %v1109 = vrcp.pop %v1108
        %v1110 = vmul.f32 %v1105, %v1109
        %1111 = vrot.lane.b32.xlu0 %v515, 40
        %v1112 = vpop.permute.xlu0 %1111
        %v1115 = vsel %vm526, %v1110, 0
        %1117 = vmatprep.subr.mxu0 0.0
        %1118 = vmatpush1.msra.mxu0 %v1112
        %1119 = vmatprep.subr.mxu0 0.0
        %1120 = vmatpush1.msra.mxu0 0.0
        %1121 = vmatprep.subr.mxu0 0.0
        %1122 = vmatpush1.msra.mxu0 0.0
        %1123 = vmatprep.subr.mxu0 0.0
        %1124 = vmatpush1.msra.mxu0 0.0
        %1125 = vmatprep.subr.mxu0 0.0
        %1126 = vmatpush1.msra.mxu0 0.0
        %1127 = vmatprep.subr.mxu0 0.0
        %1128 = vmatpush1.msra.mxu0 0.0
        %1129 = vmatprep.subr.mxu0 0.0
        %1130 = vmatpush1.msra.mxu0 0.0
        %1131 = vmatprep.subr.mxu0 0.0
        %1132 = vmatpush1.msra.mxu0 0.0
        %1133 = vmatprep.subr.mxu0 0.0
        %1134 = vmatpush1.msra.mxu0 0.0
        %1135 = vmatprep.subr.mxu0 0.0
        %1136 = vmatpush1.msra.mxu0 0.0
        %1137 = vmatprep.subr.mxu0 0.0
        %1138 = vmatpush1.msra.mxu0 0.0
        %1139 = vmatprep.subr.mxu0 0.0
        %1140 = vmatpush1.msra.mxu0 0.0
        %1141 = vmatprep.subr.mxu0 0.0
        %1142 = vmatpush1.msra.mxu0 0.0
        %1143 = vmatprep.subr.mxu0 0.0
        %1144 = vmatpush1.msra.mxu0 0.0
        %1145 = vmatprep.subr.mxu0 0.0
        %1146 = vmatpush1.msra.mxu0 0.0
        %1147 = vmatprep.subr.mxu0 0.0
        %1148 = vmatpush1.msra.mxu0 0.0
        %1149 = vmatprep.subr.mxu0 0.0
        %1150 = vmatpush1.msra.mxu0 0.0
        %1151 = vmatprep.subr.mxu0 0.0
        %1152 = vmatpush1.msra.mxu0 0.0
        %1153 = vmatprep.subr.mxu0 0.0
        %1154 = vmatpush1.msra.mxu0 0.0
        %1155 = vmatprep.subr.mxu0 0.0
        %1156 = vmatpush1.msra.mxu0 0.0
        %1157 = vmatprep.subr.mxu0 0.0
        %1158 = vmatpush1.msra.mxu0 0.0
        %1159 = vmatprep.subr.mxu0 0.0
        %1160 = vmatpush1.msra.mxu0 0.0
        %1161 = vmatprep.subr.mxu0 0.0
        %1162 = vmatpush1.msra.mxu0 0.0
        %1163 = vmatprep.subr.mxu0 0.0
        %1164 = vmatpush1.msra.mxu0 0.0
        %1165 = vmatprep.subr.mxu0 0.0
        %1166 = vmatpush1.msra.mxu0 0.0
        %1167 = vmatprep.subr.mxu0 0.0
        %1168 = vmatpush1.msra.mxu0 0.0
        %1169 = vmatprep.subr.mxu0 0.0
        %1170 = vmatpush1.msra.mxu0 0.0
        %1171 = vmatprep.subr.mxu0 0.0
        %1172 = vmatpush1.msra.mxu0 0.0
        %1173 = vmatprep.subr.mxu0 0.0
        %1174 = vmatpush1.msra.mxu0 0.0
        %1175 = vmatprep.subr.mxu0 0.0
        %1176 = vmatpush1.msra.mxu0 0.0
        %1177 = vmatprep.subr.mxu0 0.0
        %1178 = vmatpush1.msra.mxu0 0.0
        %1179 = vmatprep.subr.mxu0 0.0
        %1180 = vmatpush1.msra.mxu0 0.0
        %1181 = vmatprep.mubr.f32.mxu0 0.0
        %1182 = vmatmul.mubr.f32.gmra.mrb[0].mxu0 %v1115
        %v1183 = vpop.f32.mrb[0].mxu0
        %v1184 = vadd.f32 0.0, %v1183
        %v1185 = vpop.f32.mrb[0].mxu0
        %1186 = vdwg.mxu0
        %1188 = vrot.lane.b32.xlu0 %v852, 8
        %v1189 = vpop.permute.xlu0 %1188
        %1192 = vrot.lane.b32.xlu0 %v1018, 16
        %v1193 = vpop.permute.xlu0 %1192
        %1196 = vrot.lane.b32.xlu0 %v1184, 24
        %v1197 = vpop.permute.xlu0 %1196
        %v1199 = vsel %vm526, %v686, %v1189
        %vm1200 = vcmask 130048
        %v1201 = vsel %vm1200, %v1199, %v1193
        %vm1202 = vcmask 195584
        %v1203 = vsel %vm1202, %v1201, %v1197
        %v1204 = vld [vmem:[%s4] sm:$0xff]
        %v1205 = vld [vmem:[%s4 + $0x8] sm:$0xff]
        %v1206 = vld [vmem:[%s4 + $0x10] sm:$0xff]
        %v1207 = vld [vmem:[%s4 + $0x18] sm:$0xff]
        %v1208 = vld [vmem:[%s5] sm:$0x1]
        %v1210 = vlaneseq
        %v1211 = vshrl.u32 %v1210, 7
        %v1212 = vsub.s32 0, %v1211
        %v1213 = vrot.slane %v1208, %v1212
        %v1216 = vsel %vm412, %v1203, 0
        %1218 = vmatprep.subr.mxu0 0.0
        %1219 = vmatpush1.msra.mxu0 %v1204
        %1220 = vmatprep.subr.mxu0 0.0
        %1221 = vmatpush1.msra.mxu0 %v1205
        %1222 = vmatprep.subr.mxu0 0.0
        %1223 = vmatpush1.msra.mxu0 %v1206
        %1224 = vmatprep.subr.mxu0 0.0
        %1225 = vmatpush1.msra.mxu0 %v1207
        %1226 = vmatprep.subr.mxu0 0.0
        %1227 = vmatpush1.msra.mxu0 0.0
        %1228 = vmatprep.subr.mxu0 0.0
        %1229 = vmatpush1.msra.mxu0 0.0
        %1230 = vmatprep.subr.mxu0 0.0
        %1231 = vmatpush1.msra.mxu0 0.0
        %1232 = vmatprep.subr.mxu0 0.0
        %1233 = vmatpush1.msra.mxu0 0.0
        %1234 = vmatprep.subr.mxu0 0.0
        %1235 = vmatpush1.msra.mxu0 0.0
        %1236 = vmatprep.subr.mxu0 0.0
        %1237 = vmatpush1.msra.mxu0 0.0
        %1238 = vmatprep.subr.mxu0 0.0
        %1239 = vmatpush1.msra.mxu0 0.0
        %1240 = vmatprep.subr.mxu0 0.0
        %1241 = vmatpush1.msra.mxu0 0.0
        %1242 = vmatprep.subr.mxu0 0.0
        %1243 = vmatpush1.msra.mxu0 0.0
        %1244 = vmatprep.subr.mxu0 0.0
        %1245 = vmatpush1.msra.mxu0 0.0
        %1246 = vmatprep.subr.mxu0 0.0
        %1247 = vmatpush1.msra.mxu0 0.0
        %1248 = vmatprep.subr.mxu0 0.0
        %1249 = vmatpush1.msra.mxu0 0.0
        %1250 = vmatprep.subr.mxu0 0.0
        %1251 = vmatpush1.msra.mxu0 0.0
        %1252 = vmatprep.subr.mxu0 0.0
        %1253 = vmatpush1.msra.mxu0 0.0
        %1254 = vmatprep.subr.mxu0 0.0
        %1255 = vmatpush1.msra.mxu0 0.0
        %1256 = vmatprep.subr.mxu0 0.0
        %1257 = vmatpush1.msra.mxu0 0.0
        %1258 = vmatprep.subr.mxu0 0.0
        %1259 = vmatpush1.msra.mxu0 0.0
        %1260 = vmatprep.subr.mxu0 0.0
        %1261 = vmatpush1.msra.mxu0 0.0
        %1262 = vmatprep.subr.mxu0 0.0
        %1263 = vmatpush1.msra.mxu0 0.0
        %1264 = vmatprep.subr.mxu0 0.0
        %1265 = vmatpush1.msra.mxu0 0.0
        %1266 = vmatprep.subr.mxu0 0.0
        %1267 = vmatpush1.msra.mxu0 0.0
        %1268 = vmatprep.subr.mxu0 0.0
        %1269 = vmatpush1.msra.mxu0 0.0
        %1270 = vmatprep.subr.mxu0 0.0
        %1271 = vmatpush1.msra.mxu0 0.0
        %1272 = vmatprep.subr.mxu0 0.0
        %1273 = vmatpush1.msra.mxu0 0.0
        %1274 = vmatprep.subr.mxu0 0.0
        %1275 = vmatpush1.msra.mxu0 0.0
        %1276 = vmatprep.subr.mxu0 0.0
        %1277 = vmatpush1.msra.mxu0 0.0
        %1278 = vmatprep.subr.mxu0 0.0
        %1279 = vmatpush1.msra.mxu0 0.0
        %1280 = vmatprep.subr.mxu0 0.0
        %1281 = vmatpush1.msra.mxu0 0.0
        %1282 = vmatprep.mubr.f32.mxu0 0.0
        %1283 = vmatmul.mubr.f32.gmra.mrb[0].mxu0 %v1216
        %v1284 = vpop.f32.mrb[0].mxu0
        %v1285 = vadd.f32 %v1213, %v1284
        %v1286 = vpop.f32.mrb[0].mxu0
        %1287 = vdwg.mxu0
        %v1288 = vadd.f32 %v409, %v1285
        %v1289 = vld [vmem:[%s6] sm:$0x1]
        %v1290 = vld [vmem:[%s7] sm:$0x1]
        %v1291 = vsel %vm412, %v1288, 0.0
        %1292 = vadd.xlane.f32.xlu0 %v1291
        %v1293 = vpop.xlane.xlu0 %1292
        %v1294 = vmul.f32 %v1293, %v416
        %v1295 = vsub.f32 %v1288, %v1294
        %v1296 = vmul.f32 %v1295, %v1295
        %v1297 = vsel %vm412, %v1296, 0.0
        %1298 = vadd.xlane.f32.xlu0 %v1297
        %v1299 = vpop.xlane.xlu0 %1298
        %v1300 = vmul.f32 %v1299, %v416
        %v1301 = vadd.f32 %v1300, 1e-05
        %v1302 = vrsqrt.pop %v1301
        %v1303 = vmul.f32 %v1295, %v1302
        %v1305 = vlaneseq
        %v1306 = vshrl.u32 %v1305, 7
        %v1307 = vsub.s32 0, %v1306
        %v1308 = vrot.slane %v1289, %v1307
        %v1310 = vmul.f32 %v1303, %v1308
        %v1312 = vlaneseq
        %v1313 = vshrl.u32 %v1312, 7
        %v1314 = vsub.s32 0, %v1313
        %v1315 = vrot.slane %v1290, %v1314
        %v1317 = vadd.f32 %v1310, %v1315
        %v1318 = vld [vmem:[%s8] sm:$0xff]
        %v1319 = vld [vmem:[%s8 + $0x8] sm:$0xff]
        %v1320 = vld [vmem:[%s8 + $0x10] sm:$0xff]
        %v1321 = vld [vmem:[%s8 + $0x18] sm:$0xff]
        %v1322 = vld [vmem:[%s9] sm:$0x1]
        %v1324 = vlaneseq
        %v1325 = vshrl.u32 %v1324, 7
        %v1326 = vsub.s32 0, %v1325
        %v1327 = vrot.slane %v1322, %v1326
        %v1330 = vsel %vm412, %v1317, 0
        %1332 = vmatprep.subr.mxu0 0.0
        %1333 = vmatpush1.msra.mxu0 %v1318
        %1334 = vmatprep.subr.mxu0 0.0
        %1335 = vmatpush1.msra.mxu0 %v1319
        %1336 = vmatprep.subr.mxu0 0.0
        %1337 = vmatpush1.msra.mxu0 %v1320
        %1338 = vmatprep.subr.mxu0 0.0
        %1339 = vmatpush1.msra.mxu0 %v1321
        %1340 = vmatprep.subr.mxu0 0.0
        %1341 = vmatpush1.msra.mxu0 0.0
        %1342 = vmatprep.subr.mxu0 0.0
        %1343 = vmatpush1.msra.mxu0 0.0
        %1344 = vmatprep.subr.mxu0 0.0
        %1345 = vmatpush1.msra.mxu0 0.0
        %1346 = vmatprep.subr.mxu0 0.0
        %1347 = vmatpush1.msra.mxu0 0.0
        %1348 = vmatprep.subr.mxu0 0.0
        %1349 = vmatpush1.msra.mxu0 0.0
        %1350 = vmatprep.subr.mxu0 0.0
        %1351 = vmatpush1.msra.mxu0 0.0
        %1352 = vmatprep.subr.mxu0 0.0
        %1353 = vmatpush1.msra.mxu0 0.0
        %1354 = vmatprep.subr.mxu0 0.0
        %1355 = vmatpush1.msra.mxu0 0.0
        %1356 = vmatprep.subr.mxu0 0.0
        %1357 = vmatpush1.msra.mxu0 0.0
        %1358 = vmatprep.subr.mxu0 0.0
        %1359 = vmatpush1.msra.mxu0 0.0
        %1360 = vmatprep.subr.mxu0 0.0
        %1361 = vmatpush1.msra.mxu0 0.0
        %1362 = vmatprep.subr.mxu0 0.0
        %1363 = vmatpush1.msra.mxu0 0.0
        %1364 = vmatprep.subr.mxu0 0.0
        %1365 = vmatpush1.msra.mxu0 0.0
        %1366 = vmatprep.subr.mxu0 0.0
        %1367 = vmatpush1.msra.mxu0 0.0
        %1368 = vmatprep.subr.mxu0 0.0
        %1369 = vmatpush1.msra.mxu0 0.0
        %1370 = vmatprep.subr.mxu0 0.0
        %1371 = vmatpush1.msra.mxu0 0.0
        %1372 = vmatprep.subr.mxu0 0.0
        %1373 = vmatpush1.msra.mxu0 0.0
        %1374 = vmatprep.subr.mxu0 0.0
        %1375 = vmatpush1.msra.mxu0 0.0
        %1376 = vmatprep.subr.mxu0 0.0
        %1377 = vmatpush1.msra.mxu0 0.0
        %1378 = vmatprep.subr.mxu0 0.0
        %1379 = vmatpush1.msra.mxu0 0.0
        %1380 = vmatprep.subr.mxu0 0.0
        %1381 = vmatpush1.msra.mxu0 0.0
        %1382 = vmatprep.subr.mxu0 0.0
        %1383 = vmatpush1.msra.mxu0 0.0
        %1384 = vmatprep.subr.mxu0 0.0
        %1385 = vmatpush1.msra.mxu0 0.0
        %1386 = vmatprep.subr.mxu0 0.0
        %1387 = vmatpush1.msra.mxu0 0.0
        %1388 = vmatprep.subr.mxu0 0.0
        %1389 = vmatpush1.msra.mxu0 0.0
        %1390 = vmatprep.subr.mxu0 0.0
        %1391 = vmatpush1.msra.mxu0 0.0
        %1392 = vmatprep.subr.mxu0 0.0
        %1393 = vmatpush1.msra.mxu0 0.0
        %1394 = vmatprep.subr.mxu0 0.0
        %1395 = vmatpush1.msra.mxu0 0.0
        %1396 = vmatprep.mubr.f32.mxu0 0.0
        %1397 = vmatmul.mubr.f32.gmra.mrb[0].mxu0 %v1330
        %v1398 = vpop.f32.mrb[0].mxu0
        %v1399 = vadd.f32 %v1327, %v1398
        %v1400 = vpop.f32.mrb[0].mxu0
        %1401 = vdwg.mxu0
        %v1402 = vmax.f32 %v1399, 0.0
        %v1403 = vld [vmem:[%s10] sm:$0xff]
        %v1404 = vld [vmem:[%s10 + $0x8] sm:$0xff]
        %v1405 = vld [vmem:[%s10 + $0x10] sm:$0xff]
        %v1406 = vld [vmem:[%s10 + $0x18] sm:$0xff]
        %v1407 = vld [vmem:[%s10 + $0x20] sm:$0xff]
        %v1408 = vld [vmem:[%s10 + $0x28] sm:$0xff]
        %v1409 = vld [vmem:[%s10 + $0x30] sm:$0xff]
        %v1410 = vld [vmem:[%s10 + $0x38] sm:$0xff]
        %v1411 = vld [vmem:[%s10 + $0x40] sm:$0xff]
        %v1412 = vld [vmem:[%s10 + $0x48] sm:$0xff]
        %v1413 = vld [vmem:[%s10 + $0x50] sm:$0xff]
        %v1414 = vld [vmem:[%s10 + $0x58] sm:$0xff]
        %v1415 = vld [vmem:[%s10 + $0x60] sm:$0xff]
        %v1416 = vld [vmem:[%s10 + $0x68] sm:$0xff]
        %v1417 = vld [vmem:[%s10 + $0x70] sm:$0xff]
        %v1418 = vld [vmem:[%s10 + $0x78] sm:$0xff]
        %v1419 = vld [vmem:[%s11] sm:$0x1]
        %v1421 = vlaneseq
        %v1422 = vshrl.u32 %v1421, 7
        %v1423 = vsub.s32 0, %v1422
        %v1424 = vrot.slane %v1419, %v1423
        %1426 = vmatprep.subr.mxu0 0.0
        %1427 = vmatpush1.msra.mxu0 %v1403
        %1428 = vmatprep.subr.mxu0 0.0
        %1429 = vmatpush1.msra.mxu0 %v1404
        %1430 = vmatprep.subr.mxu0 0.0
        %1431 = vmatpush1.msra.mxu0 %v1405
        %1432 = vmatprep.subr.mxu0 0.0
        %1433 = vmatpush1.msra.mxu0 %v1406
        %1434 = vmatprep.subr.mxu0 0.0
        %1435 = vmatpush1.msra.mxu0 %v1407
        %1436 = vmatprep.subr.mxu0 0.0
        %1437 = vmatpush1.msra.mxu0 %v1408
        %1438 = vmatprep.subr.mxu0 0.0
        %1439 = vmatpush1.msra.mxu0 %v1409
        %1440 = vmatprep.subr.mxu0 0.0
        %1441 = vmatpush1.msra.mxu0 %v1410
        %1442 = vmatprep.subr.mxu0 0.0
        %1443 = vmatpush1.msra.mxu0 %v1411
        %1444 = vmatprep.subr.mxu0 0.0
        %1445 = vmatpush1.msra.mxu0 %v1412
        %1446 = vmatprep.subr.mxu0 0.0
        %1447 = vmatpush1.msra.mxu0 %v1413
        %1448 = vmatprep.subr.mxu0 0.0
        %1449 = vmatpush1.msra.mxu0 %v1414
        %1450 = vmatprep.subr.mxu0 0.0
        %1451 = vmatpush1.msra.mxu0 %v1415
        %1452 = vmatprep.subr.mxu0 0.0
        %1453 = vmatpush1.msra.mxu0 %v1416
        %1454 = vmatprep.subr.mxu0 0.0
        %1455 = vmatpush1.msra.mxu0 %v1417
        %1456 = vmatprep.subr.mxu0 0.0
        %1457 = vmatpush1.msra.mxu0 %v1418
        %1458 = vmatprep.subr.mxu0 0.0
        %1459 = vmatpush1.msra.mxu0 0.0
        %1460 = vmatprep.subr.mxu0 0.0
        %1461 = vmatpush1.msra.mxu0 0.0
        %1462 = vmatprep.subr.mxu0 0.0
        %1463 = vmatpush1.msra.mxu0 0.0
        %1464 = vmatprep.subr.mxu0 0.0
        %1465 = vmatpush1.msra.mxu0 0.0
        %1466 = vmatprep.subr.mxu0 0.0
        %1467 = vmatpush1.msra.mxu0 0.0
        %1468 = vmatprep.subr.mxu0 0.0
        %1469 = vmatpush1.msra.mxu0 0.0
        %1470 = vmatprep.subr.mxu0 0.0
        %1471 = vmatpush1.msra.mxu0 0.0
        %1472 = vmatprep.subr.mxu0 0.0
        %1473 = vmatpush1.msra.mxu0 0.0
        %1474 = vmatprep.subr.mxu0 0.0
        %1475 = vmatpush1.msra.mxu0 0.0
        %1476 = vmatprep.subr.mxu0 0.0
        %1477 = vmatpush1.msra.mxu0 0.0
        %1478 = vmatprep.subr.mxu0 0.0
        %1479 = vmatpush1.msra.mxu0 0.0
        %1480 = vmatprep.subr.mxu0 0.0
        %1481 = vmatpush1.msra.mxu0 0.0
        %1482 = vmatprep.subr.mxu0 0.0
        %1483 = vmatpush1.msra.mxu0 0.0
        %1484 = vmatprep.subr.mxu0 0.0
        %1485 = vmatpush1.msra.mxu0 0.0
        %1486 = vmatprep.subr.mxu0 0.0
        %1487 = vmatpush1.msra.mxu0 0.0
        %1488 = vmatprep.subr.mxu0 0.0
        %1489 = vmatpush1.msra.mxu0 0.0
        %1490 = vmatprep.mubr.f32.mxu0 0.0
        %1491 = vmatmul.mubr.f32.gmra.mrb[0].mxu0 %v1402
        %v1492 = vpop.f32.mrb[0].mxu0
        %v1493 = vadd.f32 %v1424, %v1492
        %v1494 = vpop.f32.mrb[0].mxu0
        %1495 = vdwg.mxu0
        %v1496 = vadd.f32 %v1288, %v1493
        %1497 = vst.msk [vmem:[%s404] sm:$0xff] %vm412, %v1496
        %s1498 = sand.u32 %s291, 1
        %s1499 = scalar_lea.sflag [#allocation3], %s1498
        %s1500 = sand.u32 %s291, 1
        %s1501 = smul.addr %s1500, 8
        %s1502 = scalar_lea.vmem [#allocation2], %s1501
        // Predicated region
        $region69: #{tpu_custom_call.1} parent=67 // pred_check
          %p1503 = pneg %p301
        $region70: #{tpu_custom_call.1} parent=67 // pred_check_branch
          %1505 = sbr.rel (%p1503) target = $region72
        $region71: #{tpu_custom_call.1} parent=67 // pred_region
          %s1507 = ssub.s32 128, 128
          %1508 = vsyncadd %s1499, %s1507
          %s1509 = smul.addr %s26, 128
          %s1510 = scalar_lea.hbm %s12, %s1509
          %s1512 = sshll.u32 %s1502, 4
          %s1513 = int_to_ptr.vmem [resolvable:$true] %s1512
          %1515 = dma.vmem_to_hbm [thread:$0]  %s1513, 128, %s1510, %s1499
        $region72: #{tpu_custom_call.1} parent=67 // pred_fallthru
          _
      $region68: #{tpu_custom_call.1} parent=5 // pred_fallthru
        _
      %p1516 = scmp.le.s32.totalorder 2, %s21
      // Predicated region
      $region73: #{tpu_custom_call.1} parent=5 // pred_check
        %p1517 = pneg %p1516
      $region74: #{tpu_custom_call.1} parent=5 // pred_check_branch
        %1519 = sbr.rel (%p1517) target = $region76
      $region75: #{tpu_custom_call.1} parent=5 // pred_region
        %s1520 = ssub.s32 %s21, 2
        // Predicated region
        $region77: #{tpu_custom_call.1} parent=75 // pred_check
          %p1521 = pneg %p307
        $region78: #{tpu_custom_call.1} parent=75 // pred_check_branch
          %1523 = sbr.rel (%p1521) target = $region80
        $region79: #{tpu_custom_call.1} parent=75 // pred_region
          %s1524 = sand.u32 %s292, 1
          %s1525 = scalar_lea.sflag [#allocation3], %s1524
          %s1526 = sand.u32 %s292, 1
          %s1527 = smul.addr %s1526, 8
          %s1528 = scalar_lea.vmem [#allocation2], %s1527
          %1529 = dma.done %s1525, 128
        $region80: #{tpu_custom_call.1} parent=75 // pred_fallthru
          _
      $region76: #{tpu_custom_call.1} parent=5 // pred_fallthru
        _
    $region6: #{tpu_custom_call.1} parent=1 // loop_footer
      %s25 = sadd.s32 1, %s21
    $region7: #{tpu_custom_call.1} parent=1 // loop_footer_branch
      %20 = sbr.rel target = $region3
    $region8: #{tpu_custom_call.1} parent=1 // loop_exit
      _
    %1530 = vsyncpa [#allocation3], 1
    %s1531 = scalar_lea.sflag [#allocation3], 1
    %1532 = vsyncpa %s1531, 1

</llo_original>
